<compile_context>
chip_gen: v7x
topology: tpu7x:2x2x1
jax: 0.10.0
libtpu: 0.0.40
codegen_flags: <defaults>
</compile_context>

<pallas_src>
import math

import jax
import jax.numpy as jnp
from jax import lax
from jax.experimental import pallas as pl
from jax.experimental.pallas import tpu as pltpu


# ---------------------------------------------------------------------------
# Kernel body
# ---------------------------------------------------------------------------
def _layernorm_f32(v, w_row, b_row, eps=1e-5):
    """LayerNorm over last dim, computed in float32 (matches CLIP LayerNorm)."""
    v32 = v.astype(jnp.float32)
    mu = jnp.mean(v32, axis=-1, keepdims=True)
    var = jnp.mean((v32 - mu) ** 2, axis=-1, keepdims=True)
    return (v32 - mu) * lax.rsqrt(var + eps) * w_row + b_row


def _resblock_body(x_ref, mask_ref,
                   ln1_w_ref, ln1_b_ref, wqkv_ref, bqkv_ref, wout_ref, bout_ref,
                   ln2_w_ref, ln2_b_ref, wfc_ref, bfc_ref, wproj_ref, bproj_ref,
                   o_ref, qkv_sc, attn_sc, *, n_head, hidden_chunk):
    nb, L, D = x_ref.shape
    hd = D // n_head
    R = nb * L

    x = x_ref[...].astype(jnp.float32).reshape(R, D)           # f32 (R, D)

    # ---- attention branch ---------------------------------------------------
    h = _layernorm_f32(x, ln1_w_ref[0], ln1_b_ref[0])           # f32 (R, D)
    qkv = jnp.dot(h.astype(jnp.bfloat16), wqkv_ref[...],
                  preferred_element_type=jnp.float32) + bqkv_ref[0]   # (R, 3D)
    # NOTE: 1/sqrt(hd) is already folded into the Q columns of wqkv / bqkv.
    # Single f32->bf16 pack; all head slices come from this bf16 scratch.
    qkv_sc[...] = qkv.astype(jnp.bfloat16).reshape(nb, L, 3 * D)

    mask = None if mask_ref is None else mask_ref[...].astype(jnp.float32)

    def batch_body(b, carry):
        qkvb = qkv_sc[b]                                        # (L, 3D) bf16
        for hh in range(n_head):                                # short static unroll
            c0 = hh * hd
            qh = qkvb[:, c0:c0 + hd]                            # (L, hd) bf16
            kh = qkvb[:, D + c0:D + c0 + hd]
            vh = qkvb[:, 2 * D + c0:2 * D + c0 + hd]
            # Q @ K^T via dot_general contracting the head dim (no transpose).
            s = lax.dot_general(qh, kh, (((1,), (1,)), ((), ())),
                                preferred_element_type=jnp.float32)   # (L, L)
            if mask is not None:
                s = s + mask
            s = s - jnp.max(s, axis=-1, keepdims=True)
            p = jnp.exp(s)
            p = p * pl.reciprocal(jnp.sum(p, axis=-1, keepdims=True),
                                  approx=True)
            head = jnp.dot(p.astype(jnp.bfloat16), vh,
                           preferred_element_type=jnp.float32)         # (L, hd)
            # Write this head's output at its lane offset; out_proj is done
            # later as ONE full-depth GEMM over all heads.
            attn_sc[pl.ds(b, 1), :, c0:c0 + hd] = (
                head.astype(attn_sc.dtype)[None])
        return carry

    lax.fori_loop(0, nb, batch_body, 0)

    attn = attn_sc[...].reshape(R, D)                           # bf16 (R, D)
    x = x + jnp.dot(attn, wout_ref[...],
                    preferred_element_type=jnp.float32) + bout_ref[0]

    # ---- MLP branch (hidden dim chunked so (R,4D) f32 is never live) --------
    h2 = _layernorm_f32(x, ln2_w_ref[0], ln2_b_ref[0]).astype(jnp.bfloat16)
    H = 4 * D
    m = jnp.zeros((R, D), jnp.float32)
    for c0 in range(0, H, hidden_chunk):
        g = jnp.dot(h2, wfc_ref[:, c0:c0 + hidden_chunk],
                    preferred_element_type=jnp.float32) + bfc_ref[0, c0:c0 + hidden_chunk]
        g = g * jax.nn.sigmoid(1.702 * g)                        # QuickGELU
        m = m + jnp.dot(g.astype(jnp.bfloat16),
                        wproj_ref[c0:c0 + hidden_chunk, :],
                        preferred_element_type=jnp.float32)
    x = x + m + bproj_ref[0]

    o_ref[...] = x.reshape(nb, L, D).astype(o_ref.dtype)


def _make_kernel(n_head, has_mask, hidden_chunk):
    def kernel(*refs):
        if has_mask:
            x_ref, mask_ref, *rest = refs
        else:
            x_ref, *rest = refs
            mask_ref = None
        (ln1_w, ln1_b, wqkv, bqkv, wout, bout,
         ln2_w, ln2_b, wfc, bfc, wproj, bproj,
         o_ref, qkv_sc, attn_sc) = rest
        _resblock_body(x_ref, mask_ref, ln1_w, ln1_b, wqkv, bqkv, wout, bout,
                       ln2_w, ln2_b, wfc, bfc, wproj, bproj,
                       o_ref, qkv_sc, attn_sc,
                       n_head=n_head, hidden_chunk=hidden_chunk)
    return kernel


# ---------------------------------------------------------------------------
# Sizing heuristics (generation aware)
# ---------------------------------------------------------------------------
def _device_info():
    """Best-effort (vmem_capacity_bytes, has_two_tensorcores)."""
    vmem_cap = None
    two_cores = False
    try:
        vmem_cap = int(pltpu.get_tpu_info().vmem_capacity_bytes)
    except Exception:
        vmem_cap = None
    try:
        kind = jax.devices()[0].device_kind.lower()
        two_cores = "v7" in kind
        if vmem_cap is None:
            vmem_cap = (64 << 20) if two_cores else (128 << 20)
    except Exception:
        pass
    if vmem_cap is None:
        vmem_cap = 64 << 20  # conservative fallback
    return vmem_cap, two_cores


def _pick_hidden_chunk(H, target=1024):
    """Chunk of the 4*D hidden dim; multiple of 128 dividing H (or H itself)."""
    if H <= target:
        return H
    for c in range(target, 0, -128):
        if H % c == 0:
            return c
    return H


def _live_bytes_estimate(nb, L, D, params_bytes, act_itemsize, has_mask,
                         hidden_chunk):
    R = nb * L
    weights = 2 * params_bytes                       # worst case: double-buffered
    io = 2 * 2 * R * D * act_itemsize                # x in + out blocks, 2-buffered
    scratch = R * 3 * D * 2 + R * D * 2              # bf16 qkv + attn scratches
    f32_live = 8 * R * D * 4 + 2 * R * hidden_chunk * 4 + 2 * L * L * 4
    mask_b = 2 * L * L * 4 if has_mask else 0
    return weights + io + scratch + f32_live + mask_b + (2 << 20)


def _pick_block_batch(N, L, D, params_bytes, act_itemsize, has_mask,
                      hidden_chunk, vmem_cap, two_cores, max_rows=2048):
    """Largest nb dividing N whose estimated live set fits ~70% of VMEM.
    Only require >= 2 grid steps on chips with 2 TensorCores (v7x)."""
    budget = int(0.70 * vmem_cap)
    best = 1
    for nb in range(1, N + 1):
        if N % nb != 0:
            continue
        if nb * L > max_rows:
            continue
        if two_cores and N >= 2 and (N // nb) < 2:
            continue
        if _live_bytes_estimate(nb, L, D, params_bytes, act_itemsize,
                                has_mask, hidden_chunk) <= budget:
            best = nb
    return best


# ---------------------------------------------------------------------------
# One ResidualAttentionBlock
# ---------------------------------------------------------------------------
def _run_block(x_nld, mask, layer_params, n_head, nb, hidden_chunk, vmem_cap):
    N, L, D = x_nld.shape
    has_mask = mask is not None
    grid = (N // nb,)

    act_itemsize = jnp.dtype(x_nld.dtype).itemsize
    params_bytes = sum(int(p.size) * p.dtype.itemsize for p in layer_params)

    est = _live_bytes_estimate(nb, L, D, params_bytes, act_itemsize, has_mask,
                               hidden_chunk)
    vmem_limit = int(min(int(0.85 * vmem_cap),
                         max(32 << 20, int(1.25 * est))))

    x_spec = pl.BlockSpec((nb, L, D), lambda b: (b, 0, 0))
    out_spec = pl.BlockSpec((nb, L, D), lambda b: (b, 0, 0))

    def const_spec(a):
        zeros = (0,) * a.ndim
        return pl.BlockSpec(a.shape, lambda b, _z=zeros: _z)

    in_specs = [x_spec]
    if has_mask:
        in_specs.append(const_spec(mask))
    in_specs += [const_spec(p) for p in layer_params]

    flops = N * (24 * L * D * D + 4 * L * L * D)
    transcendentals = N * (n_head * L * L + 5 * L * D)
    bytes_accessed = (params_bytes + 2 * N * L * D * act_itemsize
                      + (L * L * 4 if has_mask else 0))

    call = pl.pallas_call(
        _make_kernel(n_head, has_mask, hidden_chunk),
        out_shape=jax.ShapeDtypeStruct((N, L, D), x_nld.dtype),
        grid=grid,
        in_specs=in_specs,
        out_specs=out_spec,
        scratch_shapes=[pltpu.VMEM((nb, L, 3 * D), jnp.bfloat16),
                        pltpu.VMEM((nb, L, D), jnp.bfloat16)],
        compiler_params=pltpu.CompilerParams(
            dimension_semantics=("parallel",),
            vmem_limit_bytes=vmem_limit),
        cost_estimate=pl.CostEstimate(
            flops=int(flops),
            transcendentals=int(transcendentals),
            bytes_accessed=int(bytes_accessed)),
    )

    args = (x_nld, mask) if has_mask else (x_nld,)
    return call(*(args + tuple(layer_params)))


# ---------------------------------------------------------------------------
# Parameter prep and full forward
# ---------------------------------------------------------------------------
def prepare_kernel_params(params, n_head):
    """Cast weights to bf16 (biases / LN params stay f32) and fold the
    1/sqrt(hd) attention scale into the Q columns of W_qkv / b_qkv."""
    prepped = []
    for (ln1_w, ln1_b, wqkv, bqkv, wout, bout,
         ln2_w, ln2_b, wfc, bfc, wproj, bproj) in params:
        D = wout.shape[0]
        hd = D // n_head
        scale = 1.0 / math.sqrt(hd)
        scale_vec = jnp.concatenate(
            [jnp.full((D,), scale, jnp.float32), jnp.ones((2 * D,), jnp.float32)])
        wqkv_s = (wqkv.astype(jnp.float32) * scale_vec[None, :]).astype(jnp.bfloat16)
        bqkv_s = bqkv.astype(jnp.float32) * scale_vec[None, :]
        prepped.append((
            ln1_w.astype(jnp.float32), ln1_b.astype(jnp.float32),
            wqkv_s, bqkv_s,
            wout.astype(jnp.bfloat16), bout.astype(jnp.float32),
            ln2_w.astype(jnp.float32), ln2_b.astype(jnp.float32),
            wfc.astype(jnp.bfloat16), bfc.astype(jnp.float32),
            wproj.astype(jnp.bfloat16), bproj.astype(jnp.float32),
        ))
    return prepped


def transformer_forward(x_lnd, params, n_head, attn_mask=None, block_batch=None,
                        activation_dtype=jnp.bfloat16):
    """x_lnd: (L, N, D); params: list of per-layer f32 weight tuples.
    Inter-layer activations are carried in `activation_dtype` (default bf16);
    the final output is cast back to the input dtype."""
    L, N, D = x_lnd.shape
    assert D % n_head == 0
    # TODO(synk): for L not a multiple of 8 (e.g. CLIP text L=77) pad the
    # sequence to a multiple of 8 and mask the padded keys so per-batch
    # reshapes stay layout-free.
    orig_dtype = x_lnd.dtype
    kparams = prepare_kernel_params(params, n_head)
    mask = None if attn_mask is None else jnp.asarray(attn_mask, jnp.float32)
    has_mask = mask is not None

    vmem_cap, two_cores = _device_info()
    hidden_chunk = _pick_hidden_chunk(4 * D)
    params_bytes = sum(int(p.size) * p.dtype.itemsize for p in kparams[0])
    act_itemsize = jnp.dtype(activation_dtype).itemsize
    nb = (block_batch if block_batch is not None else
          _pick_block_batch(N, L, D, params_bytes, act_itemsize, has_mask,
                            hidden_chunk, vmem_cap, two_cores))
    assert N % nb == 0, "block_batch must divide batch size"

    x = jnp.transpose(x_lnd, (1, 0, 2)).astype(activation_dtype)   # (N, L, D)
    for layer_params in kparams:
        x = _run_block(x, mask, layer_params, n_head, nb, hidden_chunk, vmem_cap)
    return jnp.transpose(x, (1, 0, 2)).astype(orig_dtype)          # (L, N, D)


# ---------------------------------------------------------------------------
# Deterministic parameter init (shapes as in the PyTorch module, f32 master).
# ---------------------------------------------------------------------------
def init_params(key, width, layers):
    D = width
    params = []
    for _ in range(layers):
        key, *ks = jax.random.split(key, 9)
        s = 0.02
        ln1_w = jnp.ones((1, D), jnp.float32)
        ln1_b = jnp.zeros((1, D), jnp.float32)
        # nn.MultiheadAttention in_proj: (3D, D); store transposed (D, 3D).
        wqkv = (jax.random.normal(ks[0], (3 * D, D)) * s).astype(jnp.float32).T
        bqkv = (jax.random.normal(ks[1], (1, 3 * D)) * s).astype(jnp.float32)
        wout = (jax.random.normal(ks[2], (D, D)) * s).astype(jnp.float32).T
        bout = (jax.random.normal(ks[3], (1, D)) * s).astype(jnp.float32)
        ln2_w = jnp.ones((1, D), jnp.float32)
        ln2_b = jnp.zeros((1, D), jnp.float32)
        wfc = (jax.random.normal(ks[4], (4 * D, D)) * s).astype(jnp.float32).T
        bfc = (jax.random.normal(ks[5], (1, 4 * D)) * s).astype(jnp.float32)
        wproj = (jax.random.normal(ks[6], (D, 4 * D)) * s).astype(jnp.float32).T
        bproj = (jax.random.normal(ks[7], (1, D)) * s).astype(jnp.float32)
        params.append((ln1_w, ln1_b, wqkv, bqkv, wout, bout,
                       ln2_w, ln2_b, wfc, bfc, wproj, bproj))
    return params


# ---------------------------------------------------------------------------
# Pure-JAX f32 reference (same math, vectorized) for correctness checks.
# ---------------------------------------------------------------------------
def reference_forward(x_lnd, params, n_head, attn_mask=None):
    L, N, D = x_lnd.shape
    hd = D // n_head
    mask = (attn_mask.astype(jnp.float32)
            if attn_mask is not None else jnp.zeros((L, L), jnp.float32))
    x = jnp.transpose(x_lnd, (1, 0, 2)).astype(jnp.float32)   # (N, L, D)

    def ln(v, w, b, eps=1e-5):
        mu = jnp.mean(v, -1, keepdims=True)
        var = jnp.mean((v - mu) ** 2, -1, keepdims=True)
        return (v - mu) * lax.rsqrt(var + eps) * w + b

    for (ln1_w, ln1_b, wqkv, bqkv, wout, bout,
         ln2_w, ln2_b, wfc, bfc, wproj, bproj) in params:
        h = ln(x, ln1_w[0], ln1_b[0])
        qkv = h @ wqkv + bqkv[0]                               # (N, L, 3D)
        q, k, v = jnp.split(qkv, 3, axis=-1)
        q = q.reshape(N, L, n_head, hd).transpose(0, 2, 1, 3) / math.sqrt(hd)
        k = k.reshape(N, L, n_head, hd).transpose(0, 2, 1, 3)
        v = v.reshape(N, L, n_head, hd).transpose(0, 2, 1, 3)
        sc = jnp.einsum('bhld,bhmd->bhlm', q, k) + mask
        p = jax.nn.softmax(sc, axis=-1)
        o = jnp.einsum('bhlm,bhmd->bhld', p, v)
        o = o.transpose(0, 2, 1, 3).reshape(N, L, D)
        x = x + (o @ wout + bout[0])
        h2 = ln(x, ln2_w[0], ln2_b[0])
        g = h2 @ wfc + bfc[0]
        g = g * jax.nn.sigmoid(1.702 * g)
        x = x + (g @ wproj + bproj[0])
    return jnp.transpose(x, (1, 0, 2))


if __name__ == "__main__":
    # Small shapes consistent with the module: width=32, heads=4, layers=2,
    # seq=8, batch=2.  Input is (L, N, D) as in CLIP's Transformer.
    width, layers, heads = 32, 2, 4
    L, N = 8, 2

    key = jax.random.PRNGKey(0)
    key, kx = jax.random.split(key)
    x = jax.random.normal(kx, (L, N, width), dtype=jnp.float32)
    params = init_params(key, width, layers)

    # No mask (vision-transformer style).
    out = transformer_forward(x, params, heads, attn_mask=None)
    out = jax.block_until_ready(out)
    ref = reference_forward(x, params, heads, attn_mask=None)
    assert out.shape == (L, N, width)
    err = float(jnp.max(jnp.abs(out - ref)))
    assert jnp.allclose(out, ref, atol=3e-2, rtol=3e-2), (
        "mismatch (no mask): max abs err = %g" % err)

    # Causal mask (text-transformer style, as in CLIP's build_attention_mask).
    causal = jnp.triu(jnp.full((L, L), float("-inf"), jnp.float32), k=1)
    out_m = transformer_forward(x, params, heads, attn_mask=causal)
    out_m = jax.block_until_ready(out_m)
    ref_m = reference_forward(x, params, heads, attn_mask=causal)
    err_m = float(jnp.max(jnp.abs(out_m - ref_m)))
    assert jnp.allclose(out_m, ref_m, atol=3e-2, rtol=3e-2), (
        "mismatch (causal mask): max abs err = %g" % err_m)

    print("KERNEL_OK")
</pallas_src>

<mosaic_0001>
module attributes {stable_mosaic.version = 11 : i64} {
  func.func @kernel(%arg0: i32, %arg1: memref<2x8x32xbf16, #tpu.memory_space<vmem>>, %arg2: memref<1x32xf32, #tpu.memory_space<vmem>>, %arg3: memref<1x32xf32, #tpu.memory_space<vmem>>, %arg4: memref<32x96xbf16, #tpu.memory_space<vmem>>, %arg5: memref<1x96xf32, #tpu.memory_space<vmem>>, %arg6: memref<32x32xbf16, #tpu.memory_space<vmem>>, %arg7: memref<1x32xf32, #tpu.memory_space<vmem>>, %arg8: memref<1x32xf32, #tpu.memory_space<vmem>>, %arg9: memref<1x32xf32, #tpu.memory_space<vmem>>, %arg10: memref<32x128xbf16, #tpu.memory_space<vmem>>, %arg11: memref<1x128xf32, #tpu.memory_space<vmem>>, %arg12: memref<128x32xbf16, #tpu.memory_space<vmem>>, %arg13: memref<1x32xf32, #tpu.memory_space<vmem>>, %arg14: memref<2x8x32xbf16, #tpu.memory_space<vmem>>, %arg15: memref<2x8x96xbf16, #tpu.memory_space<vmem>>, %arg16: memref<2x8x32xbf16, #tpu.memory_space<vmem>>) attributes {dimension_semantics = [#tpu.dimension_semantics<parallel>], iteration_bounds = array<i64: 1>, scalar_prefetch = 0 : i64, scratch_operands = 2 : i64, tpu.core_type = #tpu.core_type<tc>, window_params = [{transform_indices = @transform_0, window_bounds = array<i64: 2, 8, 32>}, {pipeline_mode = #tpu.pipeline_mode<synchronous>, transform_indices = @transform_1, window_bounds = array<i64: 1, 32>}, {pipeline_mode = #tpu.pipeline_mode<synchronous>, transform_indices = @transform_2, window_bounds = array<i64: 1, 32>}, {pipeline_mode = #tpu.pipeline_mode<synchronous>, transform_indices = @transform_3, window_bounds = array<i64: 32, 96>}, {pipeline_mode = #tpu.pipeline_mode<synchronous>, transform_indices = @transform_4, window_bounds = array<i64: 1, 96>}, {pipeline_mode = #tpu.pipeline_mode<synchronous>, transform_indices = @transform_5, window_bounds = array<i64: 32, 32>}, {pipeline_mode = #tpu.pipeline_mode<synchronous>, transform_indices = @transform_6, window_bounds = array<i64: 1, 32>}, {pipeline_mode = #tpu.pipeline_mode<synchronous>, transform_indices = @transform_7, window_bounds = array<i64: 1, 32>}, {pipeline_mode = #tpu.pipeline_mode<synchronous>, transform_indices = @transform_8, window_bounds = array<i64: 1, 32>}, {pipeline_mode = #tpu.pipeline_mode<synchronous>, transform_indices = @transform_9, window_bounds = array<i64: 32, 128>}, {pipeline_mode = #tpu.pipeline_mode<synchronous>, transform_indices = @transform_10, window_bounds = array<i64: 1, 128>}, {pipeline_mode = #tpu.pipeline_mode<synchronous>, transform_indices = @transform_11, window_bounds = array<i64: 128, 32>}, {pipeline_mode = #tpu.pipeline_mode<synchronous>, transform_indices = @transform_12, window_bounds = array<i64: 1, 32>}, {transform_indices = @transform_13, window_bounds = array<i64: 2, 8, 32>}]} {
    %c0 = arith.constant 0 : index
    %c0_0 = arith.constant 0 : index
    %c0_1 = arith.constant 0 : index
    %0 = vector.load %arg1[%c0, %c0_0, %c0_1] : memref<2x8x32xbf16, #tpu.memory_space<vmem>>, vector<2x8x32xbf16>
    %1 = arith.extf %0 : vector<2x8x32xbf16> to vector<2x8x32xf32>
    %2 = vector.shape_cast %1 : vector<2x8x32xf32> to vector<16x32xf32>
    %c0_2 = arith.constant 0 : index
    %c0_3 = arith.constant 0 : index
    %3 = vector.load %arg2[%c0_2, %c0_3] : memref<1x32xf32, #tpu.memory_space<vmem>>, vector<1x32xf32>
    %4 = vector.shape_cast %3 : vector<1x32xf32> to vector<32xf32>
    %c0_4 = arith.constant 0 : index
    %c0_5 = arith.constant 0 : index
    %5 = vector.load %arg3[%c0_4, %c0_5] : memref<1x32xf32, #tpu.memory_space<vmem>>, vector<1x32xf32>
    %6 = vector.shape_cast %5 : vector<1x32xf32> to vector<32xf32>
    %cst = arith.constant dense<0.000000e+00> : vector<16xf32>
    %7 = vector.multi_reduction <add>, %2, %cst [1] : vector<16x32xf32> to vector<16xf32>
    %8 = vector.shape_cast %7 : vector<16xf32> to vector<16x1xf32>
    %cst_6 = arith.constant 3.200000e+01 : f32
    %9 = vector.broadcast %cst_6 : f32 to vector<16x1xf32>
    %10 = arith.divf %8, %9 : vector<16x1xf32>
    %11 = vector.broadcast %10 : vector<16x1xf32> to vector<16x32xf32>
    %12 = arith.subf %2, %11 : vector<16x32xf32>
    %13 = arith.mulf %12, %12 : vector<16x32xf32>
    %cst_7 = arith.constant dense<0.000000e+00> : vector<16xf32>
    %14 = vector.multi_reduction <add>, %13, %cst_7 [1] : vector<16x32xf32> to vector<16xf32>
    %15 = vector.shape_cast %14 : vector<16xf32> to vector<16x1xf32>
    %cst_8 = arith.constant 3.200000e+01 : f32
    %16 = vector.broadcast %cst_8 : f32 to vector<16x1xf32>
    %17 = arith.divf %15, %16 : vector<16x1xf32>
    %18 = vector.broadcast %10 : vector<16x1xf32> to vector<16x32xf32>
    %19 = arith.subf %2, %18 : vector<16x32xf32>
    %cst_9 = arith.constant 9.99999974E-6 : f32
    %20 = vector.broadcast %cst_9 : f32 to vector<16x1xf32>
    %21 = arith.addf %17, %20 : vector<16x1xf32>
    %22 = math.rsqrt %21 : vector<16x1xf32>
    %23 = vector.broadcast %22 : vector<16x1xf32> to vector<16x32xf32>
    %24 = arith.mulf %19, %23 : vector<16x32xf32>
    %25 = vector.shape_cast %4 : vector<32xf32> to vector<1x32xf32>
    %26 = vector.broadcast %25 : vector<1x32xf32> to vector<16x32xf32>
    %27 = arith.mulf %24, %26 : vector<16x32xf32>
    %28 = vector.shape_cast %6 : vector<32xf32> to vector<1x32xf32>
    %29 = vector.broadcast %28 : vector<1x32xf32> to vector<16x32xf32>
    %30 = arith.addf %27, %29 : vector<16x32xf32>
    %31 = arith.truncf %30 : vector<16x32xf32> to vector<16x32xbf16>
    %c0_10 = arith.constant 0 : index
    %c0_11 = arith.constant 0 : index
    %32 = vector.load %arg4[%c0_10, %c0_11] : memref<32x96xbf16, #tpu.memory_space<vmem>>, vector<32x96xbf16>
    %cst_12 = arith.constant dense<0.000000e+00> : vector<16x96xf32>
    %33 = tpu.matmul %31, %32, %cst_12 {dimension_numbers = #tpu.dot_dimension_numbers<[1], [0], [0], [1], [0, 0, 1, 1], [], []>} : vector<16x32xbf16>, vector<32x96xbf16>, vector<16x96xf32> -> vector<16x96xf32>
    %c0_13 = arith.constant 0 : index
    %c0_14 = arith.constant 0 : index
    %34 = vector.load %arg5[%c0_13, %c0_14] : memref<1x96xf32, #tpu.memory_space<vmem>>, vector<1x96xf32>
    %35 = vector.shape_cast %34 : vector<1x96xf32> to vector<96xf32>
    %36 = vector.shape_cast %35 : vector<96xf32> to vector<1x96xf32>
    %37 = vector.broadcast %36 : vector<1x96xf32> to vector<16x96xf32>
    %38 = arith.addf %33, %37 : vector<16x96xf32>
    %39 = arith.truncf %38 : vector<16x96xf32> to vector<16x96xbf16>
    %40 = vector.shape_cast %39 : vector<16x96xbf16> to vector<2x8x96xbf16>
    %c0_15 = arith.constant 0 : index
    %c0_16 = arith.constant 0 : index
    %c0_17 = arith.constant 0 : index
    %41 = vector.load %arg15[%c0_15, %c0_16, %c0_17] : memref<2x8x96xbf16, #tpu.memory_space<vmem>>, vector<2x8x96xbf16>
    tpu.vector_store %arg15[%c0_15, %c0_16, %c0_17], %40 {strides = array<i32>} : memref<2x8x96xbf16, #tpu.memory_space<vmem>>, vector<2x8x96xbf16>,
    %c0_i32 = arith.constant 0 : i32
    %c2_i32 = arith.constant 2 : i32
    %42 = arith.addi %c0_i32, %c2_i32 : i32
    %c1_i32 = arith.constant 1 : i32
    scf.for %arg17 = %c0_i32 to %42 step %c1_i32  : i32 {
      %111 = arith.index_cast %arg17 : i32 to index
      %c0_52 = arith.constant 0 : index
      %c0_53 = arith.constant 0 : index
      %112 = vector.load %arg15[%111, %c0_52, %c0_53] : memref<2x8x96xbf16, #tpu.memory_space<vmem>>, vector<1x8x96xbf16>
      %113 = vector.shape_cast %112 : vector<1x8x96xbf16> to vector<8x96xbf16>
      %114 = vector.extract_strided_slice %113 {offsets = [0, 0], sizes = [8, 8], strides = [1, 1]} : vector<8x96xbf16> to vector<8x8xbf16>
      %115 = vector.extract_strided_slice %113 {offsets = [0, 32], sizes = [8, 8], strides = [1, 1]} : vector<8x96xbf16> to vector<8x8xbf16>
      %116 = vector.extract_strided_slice %113 {offsets = [0, 64], sizes = [8, 8], strides = [1, 1]} : vector<8x96xbf16> to vector<8x8xbf16>
      %cst_54 = arith.constant dense<0.000000e+00> : vector<8x8xf32>
      %117 = tpu.matmul %114, %115, %cst_54 {dimension_numbers = #tpu.dot_dimension_numbers<[1], [1], [0], [0], [0, 0, 1, 0], [], []>} : vector<8x8xbf16>, vector<8x8xbf16>, vector<8x8xf32> -> vector<8x8xf32>
      %cst_55 = arith.constant dense<0xFF800000> : vector<8xf32>
      %118 = vector.multi_reduction <maximumf>, %117, %cst_55 [1] : vector<8x8xf32> to vector<8xf32>
      %119 = vector.shape_cast %118 : vector<8xf32> to vector<8x1xf32>
      %120 = vector.broadcast %119 : vector<8x1xf32> to vector<8x8xf32>
      %121 = arith.subf %117, %120 : vector<8x8xf32>
      %122 = math.exp %121 : vector<8x8xf32>
      %cst_56 = arith.constant dense<0.000000e+00> : vector<8xf32>
      %123 = vector.multi_reduction <add>, %122, %cst_56 [1] : vector<8x8xf32> to vector<8xf32>
      %124 = vector.shape_cast %123 : vector<8xf32> to vector<8x1xf32>
      %125 = tpu.reciprocal %124 {approx = true} : vector<8x1xf32> -> vector<8x1xf32>
      %126 = vector.broadcast %125 : vector<8x1xf32> to vector<8x8xf32>
      %127 = arith.mulf %122, %126 : vector<8x8xf32>
      %128 = arith.truncf %127 : vector<8x8xf32> to vector<8x8xbf16>
      %cst_57 = arith.constant dense<0.000000e+00> : vector<8x8xf32>
      %129 = tpu.matmul %128, %116, %cst_57 {dimension_numbers = #tpu.dot_dimension_numbers<[1], [0], [0], [1], [0, 0, 1, 1], [], []>} : vector<8x8xbf16>, vector<8x8xbf16>, vector<8x8xf32> -> vector<8x8xf32>
      %130 = arith.truncf %129 : vector<8x8xf32> to vector<8x8xbf16>
      %131 = vector.shape_cast %130 : vector<8x8xbf16> to vector<1x8x8xbf16>
      %132 = arith.index_cast %arg17 : i32 to index
      %c0_58 = arith.constant 0 : index
      %c0_59 = arith.constant 0 : index
      %133 = vector.load %arg16[%132, %c0_58, %c0_59] : memref<2x8x32xbf16, #tpu.memory_space<vmem>>, vector<1x8x8xbf16>
      tpu.vector_store %arg16[%132, %c0_58, %c0_59], %131 {strides = array<i32>} : memref<2x8x32xbf16, #tpu.memory_space<vmem>>, vector<1x8x8xbf16>,
      %134 = vector.extract_strided_slice %113 {offsets = [0, 8], sizes = [8, 8], strides = [1, 1]} : vector<8x96xbf16> to vector<8x8xbf16>
      %135 = vector.extract_strided_slice %113 {offsets = [0, 40], sizes = [8, 8], strides = [1, 1]} : vector<8x96xbf16> to vector<8x8xbf16>
      %136 = vector.extract_strided_slice %113 {offsets = [0, 72], sizes = [8, 8], strides = [1, 1]} : vector<8x96xbf16> to vector<8x8xbf16>
      %cst_60 = arith.constant dense<0.000000e+00> : vector<8x8xf32>
      %137 = tpu.matmul %134, %135, %cst_60 {dimension_numbers = #tpu.dot_dimension_numbers<[1], [1], [0], [0], [0, 0, 1, 0], [], []>} : vector<8x8xbf16>, vector<8x8xbf16>, vector<8x8xf32> -> vector<8x8xf32>
      %cst_61 = arith.constant dense<0xFF800000> : vector<8xf32>
      %138 = vector.multi_reduction <maximumf>, %137, %cst_61 [1] : vector<8x8xf32> to vector<8xf32>
      %139 = vector.shape_cast %138 : vector<8xf32> to vector<8x1xf32>
      %140 = vector.broadcast %139 : vector<8x1xf32> to vector<8x8xf32>
      %141 = arith.subf %137, %140 : vector<8x8xf32>
      %142 = math.exp %141 : vector<8x8xf32>
      %cst_62 = arith.constant dense<0.000000e+00> : vector<8xf32>
      %143 = vector.multi_reduction <add>, %142, %cst_62 [1] : vector<8x8xf32> to vector<8xf32>
      %144 = vector.shape_cast %143 : vector<8xf32> to vector<8x1xf32>
      %145 = tpu.reciprocal %144 {approx = true} : vector<8x1xf32> -> vector<8x1xf32>
      %146 = vector.broadcast %145 : vector<8x1xf32> to vector<8x8xf32>
      %147 = arith.mulf %142, %146 : vector<8x8xf32>
      %148 = arith.truncf %147 : vector<8x8xf32> to vector<8x8xbf16>
      %cst_63 = arith.constant dense<0.000000e+00> : vector<8x8xf32>
      %149 = tpu.matmul %148, %136, %cst_63 {dimension_numbers = #tpu.dot_dimension_numbers<[1], [0], [0], [1], [0, 0, 1, 1], [], []>} : vector<8x8xbf16>, vector<8x8xbf16>, vector<8x8xf32> -> vector<8x8xf32>
      %150 = arith.truncf %149 : vector<8x8xf32> to vector<8x8xbf16>
      %151 = vector.shape_cast %150 : vector<8x8xbf16> to vector<1x8x8xbf16>
      %152 = arith.index_cast %arg17 : i32 to index
      %c0_64 = arith.constant 0 : index
      %c8 = arith.constant 8 : index
      %153 = vector.load %arg16[%152, %c0_64, %c8] : memref<2x8x32xbf16, #tpu.memory_space<vmem>>, vector<1x8x8xbf16>
      tpu.vector_store %arg16[%152, %c0_64, %c8], %151 {strides = array<i32>} : memref<2x8x32xbf16, #tpu.memory_space<vmem>>, vector<1x8x8xbf16>,
      %154 = vector.extract_strided_slice %113 {offsets = [0, 16], sizes = [8, 8], strides = [1, 1]} : vector<8x96xbf16> to vector<8x8xbf16>
      %155 = vector.extract_strided_slice %113 {offsets = [0, 48], sizes = [8, 8], strides = [1, 1]} : vector<8x96xbf16> to vector<8x8xbf16>
      %156 = vector.extract_strided_slice %113 {offsets = [0, 80], sizes = [8, 8], strides = [1, 1]} : vector<8x96xbf16> to vector<8x8xbf16>
      %cst_65 = arith.constant dense<0.000000e+00> : vector<8x8xf32>
      %157 = tpu.matmul %154, %155, %cst_65 {dimension_numbers = #tpu.dot_dimension_numbers<[1], [1], [0], [0], [0, 0, 1, 0], [], []>} : vector<8x8xbf16>, vector<8x8xbf16>, vector<8x8xf32> -> vector<8x8xf32>
      %cst_66 = arith.constant dense<0xFF800000> : vector<8xf32>
      %158 = vector.multi_reduction <maximumf>, %157, %cst_66 [1] : vector<8x8xf32> to vector<8xf32>
      %159 = vector.shape_cast %158 : vector<8xf32> to vector<8x1xf32>
      %160 = vector.broadcast %159 : vector<8x1xf32> to vector<8x8xf32>
      %161 = arith.subf %157, %160 : vector<8x8xf32>
      %162 = math.exp %161 : vector<8x8xf32>
      %cst_67 = arith.constant dense<0.000000e+00> : vector<8xf32>
      %163 = vector.multi_reduction <add>, %162, %cst_67 [1] : vector<8x8xf32> to vector<8xf32>
      %164 = vector.shape_cast %163 : vector<8xf32> to vector<8x1xf32>
      %165 = tpu.reciprocal %164 {approx = true} : vector<8x1xf32> -> vector<8x1xf32>
      %166 = vector.broadcast %165 : vector<8x1xf32> to vector<8x8xf32>
      %167 = arith.mulf %162, %166 : vector<8x8xf32>
      %168 = arith.truncf %167 : vector<8x8xf32> to vector<8x8xbf16>
      %cst_68 = arith.constant dense<0.000000e+00> : vector<8x8xf32>
      %169 = tpu.matmul %168, %156, %cst_68 {dimension_numbers = #tpu.dot_dimension_numbers<[1], [0], [0], [1], [0, 0, 1, 1], [], []>} : vector<8x8xbf16>, vector<8x8xbf16>, vector<8x8xf32> -> vector<8x8xf32>
      %170 = arith.truncf %169 : vector<8x8xf32> to vector<8x8xbf16>
      %171 = vector.shape_cast %170 : vector<8x8xbf16> to vector<1x8x8xbf16>
      %172 = arith.index_cast %arg17 : i32 to index
      %c0_69 = arith.constant 0 : index
      %c16 = arith.constant 16 : index
      %173 = vector.load %arg16[%172, %c0_69, %c16] : memref<2x8x32xbf16, #tpu.memory_space<vmem>>, vector<1x8x8xbf16>
      tpu.vector_store %arg16[%172, %c0_69, %c16], %171 {strides = array<i32>} : memref<2x8x32xbf16, #tpu.memory_space<vmem>>, vector<1x8x8xbf16>,
      %174 = vector.extract_strided_slice %113 {offsets = [0, 24], sizes = [8, 8], strides = [1, 1]} : vector<8x96xbf16> to vector<8x8xbf16>
      %175 = vector.extract_strided_slice %113 {offsets = [0, 56], sizes = [8, 8], strides = [1, 1]} : vector<8x96xbf16> to vector<8x8xbf16>
      %176 = vector.extract_strided_slice %113 {offsets = [0, 88], sizes = [8, 8], strides = [1, 1]} : vector<8x96xbf16> to vector<8x8xbf16>
      %cst_70 = arith.constant dense<0.000000e+00> : vector<8x8xf32>
      %177 = tpu.matmul %174, %175, %cst_70 {dimension_numbers = #tpu.dot_dimension_numbers<[1], [1], [0], [0], [0, 0, 1, 0], [], []>} : vector<8x8xbf16>, vector<8x8xbf16>, vector<8x8xf32> -> vector<8x8xf32>
      %cst_71 = arith.constant dense<0xFF800000> : vector<8xf32>
      %178 = vector.multi_reduction <maximumf>, %177, %cst_71 [1] : vector<8x8xf32> to vector<8xf32>
      %179 = vector.shape_cast %178 : vector<8xf32> to vector<8x1xf32>
      %180 = vector.broadcast %179 : vector<8x1xf32> to vector<8x8xf32>
      %181 = arith.subf %177, %180 : vector<8x8xf32>
      %182 = math.exp %181 : vector<8x8xf32>
      %cst_72 = arith.constant dense<0.000000e+00> : vector<8xf32>
      %183 = vector.multi_reduction <add>, %182, %cst_72 [1] : vector<8x8xf32> to vector<8xf32>
      %184 = vector.shape_cast %183 : vector<8xf32> to vector<8x1xf32>
      %185 = tpu.reciprocal %184 {approx = true} : vector<8x1xf32> -> vector<8x1xf32>
      %186 = vector.broadcast %185 : vector<8x1xf32> to vector<8x8xf32>
      %187 = arith.mulf %182, %186 : vector<8x8xf32>
      %188 = arith.truncf %187 : vector<8x8xf32> to vector<8x8xbf16>
      %cst_73 = arith.constant dense<0.000000e+00> : vector<8x8xf32>
      %189 = tpu.matmul %188, %176, %cst_73 {dimension_numbers = #tpu.dot_dimension_numbers<[1], [0], [0], [1], [0, 0, 1, 1], [], []>} : vector<8x8xbf16>, vector<8x8xbf16>, vector<8x8xf32> -> vector<8x8xf32>
      %190 = arith.truncf %189 : vector<8x8xf32> to vector<8x8xbf16>
      %191 = vector.shape_cast %190 : vector<8x8xbf16> to vector<1x8x8xbf16>
      %192 = arith.index_cast %arg17 : i32 to index
      %c0_74 = arith.constant 0 : index
      %c24 = arith.constant 24 : index
      %193 = vector.load %arg16[%192, %c0_74, %c24] : memref<2x8x32xbf16, #tpu.memory_space<vmem>>, vector<1x8x8xbf16>
      tpu.vector_store %arg16[%192, %c0_74, %c24], %191 {strides = array<i32>} : memref<2x8x32xbf16, #tpu.memory_space<vmem>>, vector<1x8x8xbf16>,
    }
    %c2_i32_18 = arith.constant 2 : i32
    %c0_19 = arith.constant 0 : index
    %c0_20 = arith.constant 0 : index
    %c0_21 = arith.constant 0 : index
    %43 = vector.load %arg16[%c0_19, %c0_20, %c0_21] : memref<2x8x32xbf16, #tpu.memory_space<vmem>>, vector<2x8x32xbf16>
    %44 = vector.shape_cast %43 : vector<2x8x32xbf16> to vector<16x32xbf16>
    %c0_22 = arith.constant 0 : index
    %c0_23 = arith.constant 0 : index
    %45 = vector.load %arg6[%c0_22, %c0_23] : memref<32x32xbf16, #tpu.memory_space<vmem>>, vector<32x32xbf16>
    %cst_24 = arith.constant dense<0.000000e+00> : vector<16x32xf32>
    %46 = tpu.matmul %44, %45, %cst_24 {dimension_numbers = #tpu.dot_dimension_numbers<[1], [0], [0], [1], [0, 0, 1, 1], [], []>} : vector<16x32xbf16>, vector<32x32xbf16>, vector<16x32xf32> -> vector<16x32xf32>
    %47 = arith.addf %2, %46 : vector<16x32xf32>
    %c0_25 = arith.constant 0 : index
    %c0_26 = arith.constant 0 : index
    %48 = vector.load %arg7[%c0_25, %c0_26] : memref<1x32xf32, #tpu.memory_space<vmem>>, vector<1x32xf32>
    %49 = vector.shape_cast %48 : vector<1x32xf32> to vector<32xf32>
    %50 = vector.shape_cast %49 : vector<32xf32> to vector<1x32xf32>
    %51 = vector.broadcast %50 : vector<1x32xf32> to vector<16x32xf32>
    %52 = arith.addf %47, %51 : vector<16x32xf32>
    %c0_27 = arith.constant 0 : index
    %c0_28 = arith.constant 0 : index
    %53 = vector.load %arg8[%c0_27, %c0_28] : memref<1x32xf32, #tpu.memory_space<vmem>>, vector<1x32xf32>
    %54 = vector.shape_cast %53 : vector<1x32xf32> to vector<32xf32>
    %c0_29 = arith.constant 0 : index
    %c0_30 = arith.constant 0 : index
    %55 = vector.load %arg9[%c0_29, %c0_30] : memref<1x32xf32, #tpu.memory_space<vmem>>, vector<1x32xf32>
    %56 = vector.shape_cast %55 : vector<1x32xf32> to vector<32xf32>
    %cst_31 = arith.constant dense<0.000000e+00> : vector<16xf32>
    %57 = vector.multi_reduction <add>, %52, %cst_31 [1] : vector<16x32xf32> to vector<16xf32>
    %58 = vector.shape_cast %57 : vector<16xf32> to vector<16x1xf32>
    %cst_32 = arith.constant 3.200000e+01 : f32
    %59 = vector.broadcast %cst_32 : f32 to vector<16x1xf32>
    %60 = arith.divf %58, %59 : vector<16x1xf32>
    %61 = vector.broadcast %60 : vector<16x1xf32> to vector<16x32xf32>
    %62 = arith.subf %52, %61 : vector<16x32xf32>
    %63 = arith.mulf %62, %62 : vector<16x32xf32>
    %cst_33 = arith.constant dense<0.000000e+00> : vector<16xf32>
    %64 = vector.multi_reduction <add>, %63, %cst_33 [1] : vector<16x32xf32> to vector<16xf32>
    %65 = vector.shape_cast %64 : vector<16xf32> to vector<16x1xf32>
    %cst_34 = arith.constant 3.200000e+01 : f32
    %66 = vector.broadcast %cst_34 : f32 to vector<16x1xf32>
    %67 = arith.divf %65, %66 : vector<16x1xf32>
    %68 = vector.broadcast %60 : vector<16x1xf32> to vector<16x32xf32>
    %69 = arith.subf %52, %68 : vector<16x32xf32>
    %cst_35 = arith.constant 9.99999974E-6 : f32
    %70 = vector.broadcast %cst_35 : f32 to vector<16x1xf32>
    %71 = arith.addf %67, %70 : vector<16x1xf32>
    %72 = math.rsqrt %71 : vector<16x1xf32>
    %73 = vector.broadcast %72 : vector<16x1xf32> to vector<16x32xf32>
    %74 = arith.mulf %69, %73 : vector<16x32xf32>
    %75 = vector.shape_cast %54 : vector<32xf32> to vector<1x32xf32>
    %76 = vector.broadcast %75 : vector<1x32xf32> to vector<16x32xf32>
    %77 = arith.mulf %74, %76 : vector<16x32xf32>
    %78 = vector.shape_cast %56 : vector<32xf32> to vector<1x32xf32>
    %79 = vector.broadcast %78 : vector<1x32xf32> to vector<16x32xf32>
    %80 = arith.addf %77, %79 : vector<16x32xf32>
    %81 = arith.truncf %80 : vector<16x32xf32> to vector<16x32xbf16>
    %cst_36 = arith.constant 0.000000e+00 : f32
    %82 = vector.broadcast %cst_36 : f32 to vector<16x32xf32>
    %c0_37 = arith.constant 0 : index
    %c0_38 = arith.constant 0 : index
    %83 = vector.load %arg10[%c0_37, %c0_38] : memref<32x128xbf16, #tpu.memory_space<vmem>>, vector<32x128xbf16>
    %cst_39 = arith.constant dense<0.000000e+00> : vector<16x128xf32>
    %84 = tpu.matmul %81, %83, %cst_39 {dimension_numbers = #tpu.dot_dimension_numbers<[1], [0], [0], [1], [0, 0, 1, 1], [], []>} : vector<16x32xbf16>, vector<32x128xbf16>, vector<16x128xf32> -> vector<16x128xf32>
    %c0_40 = arith.constant 0 : index
    %c0_41 = arith.constant 0 : index
    %85 = vector.load %arg11[%c0_40, %c0_41] : memref<1x128xf32, #tpu.memory_space<vmem>>, vector<1x128xf32>
    %86 = vector.shape_cast %85 : vector<1x128xf32> to vector<128xf32>
    %87 = vector.shape_cast %86 : vector<128xf32> to vector<1x128xf32>
    %88 = vector.broadcast %87 : vector<1x128xf32> to vector<16x128xf32>
    %89 = arith.addf %84, %88 : vector<16x128xf32>
    %cst_42 = arith.constant 1.702000e+00 : f32
    %90 = vector.broadcast %cst_42 : f32 to vector<16x128xf32>
    %91 = arith.mulf %90, %89 : vector<16x128xf32>
    %92 = arith.negf %91 : vector<16x128xf32>
    %93 = math.exp %92 : vector<16x128xf32>
    %cst_43 = arith.constant 1.000000e+00 : f32
    %94 = vector.broadcast %cst_43 : f32 to vector<16x128xf32>
    %95 = arith.addf %94, %93 : vector<16x128xf32>
    %96 = arith.divf %94, %95 : vector<16x128xf32>
    %97 = arith.mulf %89, %96 : vector<16x128xf32>
    %98 = arith.truncf %97 : vector<16x128xf32> to vector<16x128xbf16>
    %c0_44 = arith.constant 0 : index
    %c0_45 = arith.constant 0 : index
    %99 = vector.load %arg12[%c0_44, %c0_45] : memref<128x32xbf16, #tpu.memory_space<vmem>>, vector<128x32xbf16>
    %cst_46 = arith.constant dense<0.000000e+00> : vector<16x32xf32>
    %100 = tpu.matmul %98, %99, %cst_46 {dimension_numbers = #tpu.dot_dimension_numbers<[1], [0], [0], [1], [0, 0, 1, 1], [], []>} : vector<16x128xbf16>, vector<128x32xbf16>, vector<16x32xf32> -> vector<16x32xf32>
    %101 = arith.addf %82, %100 : vector<16x32xf32>
    %102 = arith.addf %52, %101 : vector<16x32xf32>
    %c0_47 = arith.constant 0 : index
    %c0_48 = arith.constant 0 : index
    %103 = vector.load %arg13[%c0_47, %c0_48] : memref<1x32xf32, #tpu.memory_space<vmem>>, vector<1x32xf32>
    %104 = vector.shape_cast %103 : vector<1x32xf32> to vector<32xf32>
    %105 = vector.shape_cast %104 : vector<32xf32> to vector<1x32xf32>
    %106 = vector.broadcast %105 : vector<1x32xf32> to vector<16x32xf32>
    %107 = arith.addf %102, %106 : vector<16x32xf32>
    %108 = vector.shape_cast %107 : vector<16x32xf32> to vector<2x8x32xf32>
    %109 = arith.truncf %108 : vector<2x8x32xf32> to vector<2x8x32xbf16>
    %c0_49 = arith.constant 0 : index
    %c0_50 = arith.constant 0 : index
    %c0_51 = arith.constant 0 : index
    %110 = vector.load %arg14[%c0_49, %c0_50, %c0_51] : memref<2x8x32xbf16, #tpu.memory_space<vmem>>, vector<2x8x32xbf16>
    tpu.vector_store %arg14[%c0_49, %c0_50, %c0_51], %109 {strides = array<i32>} : memref<2x8x32xbf16, #tpu.memory_space<vmem>>, vector<2x8x32xbf16>,
    return
  }
  func.func @transform_0(%arg0: i32) -> (i32, i32, i32) {
    %c0_i32 = arith.constant 0 : i32
    %c0_i32_0 = arith.constant 0 : i32
    %c0_i32_1 = arith.constant 0 : i32
    return %arg0, %c0_i32, %c0_i32_0 : i32, i32, i32
  }
  func.func @transform_1(%arg0: i32) -> (i32, i32) {
    %c0_i32 = arith.constant 0 : i32
    %c0_i32_0 = arith.constant 0 : i32
    %c0_i32_1 = arith.constant 0 : i32
    return %c0_i32, %c0_i32_0 : i32, i32
  }
  func.func @transform_2(%arg0: i32) -> (i32, i32) {
    %c0_i32 = arith.constant 0 : i32
    %c0_i32_0 = arith.constant 0 : i32
    %c0_i32_1 = arith.constant 0 : i32
    return %c0_i32, %c0_i32_0 : i32, i32
  }
  func.func @transform_3(%arg0: i32) -> (i32, i32) {
    %c0_i32 = arith.constant 0 : i32
    %c0_i32_0 = arith.constant 0 : i32
    %c0_i32_1 = arith.constant 0 : i32
    return %c0_i32, %c0_i32_0 : i32, i32
  }
  func.func @transform_4(%arg0: i32) -> (i32, i32) {
    %c0_i32 = arith.constant 0 : i32
    %c0_i32_0 = arith.constant 0 : i32
    %c0_i32_1 = arith.constant 0 : i32
    return %c0_i32, %c0_i32_0 : i32, i32
  }
  func.func @transform_5(%arg0: i32) -> (i32, i32) {
    %c0_i32 = arith.constant 0 : i32
    %c0_i32_0 = arith.constant 0 : i32
    %c0_i32_1 = arith.constant 0 : i32
    return %c0_i32, %c0_i32_0 : i32, i32
  }
  func.func @transform_6(%arg0: i32) -> (i32, i32) {
    %c0_i32 = arith.constant 0 : i32
    %c0_i32_0 = arith.constant 0 : i32
    %c0_i32_1 = arith.constant 0 : i32
    return %c0_i32, %c0_i32_0 : i32, i32
  }
  func.func @transform_7(%arg0: i32) -> (i32, i32) {
    %c0_i32 = arith.constant 0 : i32
    %c0_i32_0 = arith.constant 0 : i32
    %c0_i32_1 = arith.constant 0 : i32
    return %c0_i32, %c0_i32_0 : i32, i32
  }
  func.func @transform_8(%arg0: i32) -> (i32, i32) {
    %c0_i32 = arith.constant 0 : i32
    %c0_i32_0 = arith.constant 0 : i32
    %c0_i32_1 = arith.constant 0 : i32
    return %c0_i32, %c0_i32_0 : i32, i32
  }
  func.func @transform_9(%arg0: i32) -> (i32, i32) {
    %c0_i32 = arith.constant 0 : i32
    %c0_i32_0 = arith.constant 0 : i32
    %c0_i32_1 = arith.constant 0 : i32
    return %c0_i32, %c0_i32_0 : i32, i32
  }
  func.func @transform_10(%arg0: i32) -> (i32, i32) {
    %c0_i32 = arith.constant 0 : i32
    %c0_i32_0 = arith.constant 0 : i32
    %c0_i32_1 = arith.constant 0 : i32
    return %c0_i32, %c0_i32_0 : i32, i32
  }
  func.func @transform_11(%arg0: i32) -> (i32, i32) {
    %c0_i32 = arith.constant 0 : i32
    %c0_i32_0 = arith.constant 0 : i32
    %c0_i32_1 = arith.constant 0 : i32
    return %c0_i32, %c0_i32_0 : i32, i32
  }
  func.func @transform_12(%arg0: i32) -> (i32, i32) {
    %c0_i32 = arith.constant 0 : i32
    %c0_i32_0 = arith.constant 0 : i32
    %c0_i32_1 = arith.constant 0 : i32
    return %c0_i32, %c0_i32_0 : i32, i32
  }
  func.func @transform_13(%arg0: i32) -> (i32, i32, i32) {
    %c0_i32 = arith.constant 0 : i32
    %c0_i32_0 = arith.constant 0 : i32
    %c0_i32_1 = arith.constant 0 : i32
    return %arg0, %c0_i32, %c0_i32_0 : i32, i32, i32
  }
}

</mosaic_0001>

<llo_original>
// kernel: tpu_custom_call.1
$region0: #{tpu_custom_call.1}
  #allocation0 [shape = 'u32[]', space=smem, size = 0x4, offset = 0x4, fixed_abs, tag = 'smem constant byte address 0x4 - core index']
  #allocation1 [shape = 'u32[144,128]{1,0:T(1,128)}', space=vmem, size = 0x12000, scoped, tag = 'internal scratch']
  #allocation2 [shape = 'bf16[2,8,96]{2,1,0:T(8,128)(2,1)}', space=vmem, size = 0x1000, scoped, tag = 'scratch operand']
  #allocation3 [shape = 'bf16[2,8,32]{2,1,0:T(8,128)(2,1)}', space=vmem, size = 0x1000, scoped, tag = 'scratch operand']
  %s0 = inlined_call_operand.vmem [shape: bf16[2,8,32], index: 0, kind: input, shape index: {}]
  %s1 = inlined_call_operand.vmem [shape: f32[1,32], index: 1, kind: input, shape index: {}]
  %s2 = inlined_call_operand.vmem [shape: f32[1,32], index: 2, kind: input, shape index: {}]
  %s3 = inlined_call_operand.vmem [shape: bf16[32,96], index: 3, kind: input, shape index: {}]
  %s4 = inlined_call_operand.vmem [shape: f32[1,96], index: 4, kind: input, shape index: {}]
  %s5 = inlined_call_operand.vmem [shape: bf16[32,32], index: 5, kind: input, shape index: {}]
  %s6 = inlined_call_operand.vmem [shape: f32[1,32], index: 6, kind: input, shape index: {}]
  %s7 = inlined_call_operand.vmem [shape: f32[1,32], index: 7, kind: input, shape index: {}]
  %s8 = inlined_call_operand.vmem [shape: f32[1,32], index: 8, kind: input, shape index: {}]
  %s9 = inlined_call_operand.vmem [shape: bf16[32,128], index: 9, kind: input, shape index: {}]
  %s10 = inlined_call_operand.vmem [shape: f32[1,128], index: 10, kind: input, shape index: {}]
  %s11 = inlined_call_operand.vmem [shape: bf16[128,32], index: 11, kind: input, shape index: {}]
  %s12 = inlined_call_operand.vmem [shape: f32[1,32], index: 12, kind: input, shape index: {}]
  %s13 = inlined_call_operand.hbm [shape: bf16[2,8,32], index: 13, kind: output, shape index: {}]
  %s14 = sld [smem:[#allocation0]]
  $region69: #{tpu_custom_call.1} parent=0
    _
  %s16 = ssub.s32 1, %s14
  %s17 = scalar_select 0, %s16, %s14
  $region1: #{tpu_custom_call.1} parent=0
    #allocation4 [shape = 'u8[4096]{0}', space=vmem, size = 0x1000, scoped, tag = 'output window, operand 0, single buffered']
    #allocation5 [shape = 's32[1]{0}', space=sflag, size = 0x4, scoped, tag = 'scoped memory for tpu_custom_call.1']
    %18 = vsyncpa [#allocation5], 0
    // Predicated region
    $region2: #{tpu_custom_call.1} parent=1 // pred_check
      _
    $region3: #{tpu_custom_call.1} parent=1 // pred_check_branch
      %20 = sbr.rel (0) target = $region5
    $region4: #{tpu_custom_call.1} parent=1 // pred_region
      _
    $region5: #{tpu_custom_call.1} parent=1 // pred_fallthru
      _
    // Predicated region
    $region6: #{tpu_custom_call.1} parent=1 // pred_check
      _
    $region7: #{tpu_custom_call.1} parent=1 // pred_check_branch
      %22 = sbr.rel (0) target = $region9
    $region8: #{tpu_custom_call.1} parent=1 // pred_region
      _
    $region9: #{tpu_custom_call.1} parent=1 // pred_fallthru
      _
    // Predicated region
    $region10: #{tpu_custom_call.1} parent=1 // pred_check
      _
    $region11: #{tpu_custom_call.1} parent=1 // pred_check_branch
      %24 = sbr.rel (0) target = $region13
    $region12: #{tpu_custom_call.1} parent=1 // pred_region
      _
    $region13: #{tpu_custom_call.1} parent=1 // pred_fallthru
      _
    // Predicated region
    $region14: #{tpu_custom_call.1} parent=1 // pred_check
      _
    $region15: #{tpu_custom_call.1} parent=1 // pred_check_branch
      %26 = sbr.rel (0) target = $region17
    $region16: #{tpu_custom_call.1} parent=1 // pred_region
      _
    $region17: #{tpu_custom_call.1} parent=1 // pred_fallthru
      _
    // Predicated region
    $region18: #{tpu_custom_call.1} parent=1 // pred_check
      _
    $region19: #{tpu_custom_call.1} parent=1 // pred_check_branch
      %28 = sbr.rel (0) target = $region21
    $region20: #{tpu_custom_call.1} parent=1 // pred_region
      _
    $region21: #{tpu_custom_call.1} parent=1 // pred_fallthru
      _
    // Predicated region
    $region22: #{tpu_custom_call.1} parent=1 // pred_check
      _
    $region23: #{tpu_custom_call.1} parent=1 // pred_check_branch
      %30 = sbr.rel (0) target = $region25
    $region24: #{tpu_custom_call.1} parent=1 // pred_region
      _
    $region25: #{tpu_custom_call.1} parent=1 // pred_fallthru
      _
    // Predicated region
    $region26: #{tpu_custom_call.1} parent=1 // pred_check
      _
    $region27: #{tpu_custom_call.1} parent=1 // pred_check_branch
      %32 = sbr.rel (0) target = $region29
    $region28: #{tpu_custom_call.1} parent=1 // pred_region
      _
    $region29: #{tpu_custom_call.1} parent=1 // pred_fallthru
      _
    // Predicated region
    $region30: #{tpu_custom_call.1} parent=1 // pred_check
      _
    $region31: #{tpu_custom_call.1} parent=1 // pred_check_branch
      %34 = sbr.rel (0) target = $region33
    $region32: #{tpu_custom_call.1} parent=1 // pred_region
      _
    $region33: #{tpu_custom_call.1} parent=1 // pred_fallthru
      _
    // Predicated region
    $region34: #{tpu_custom_call.1} parent=1 // pred_check
      _
    $region35: #{tpu_custom_call.1} parent=1 // pred_check_branch
      %36 = sbr.rel (0) target = $region37
    $region36: #{tpu_custom_call.1} parent=1 // pred_region
      _
    $region37: #{tpu_custom_call.1} parent=1 // pred_fallthru
      _
    // Predicated region
    $region38: #{tpu_custom_call.1} parent=1 // pred_check
      _
    $region39: #{tpu_custom_call.1} parent=1 // pred_check_branch
      %38 = sbr.rel (0) target = $region41
    $region40: #{tpu_custom_call.1} parent=1 // pred_region
      _
    $region41: #{tpu_custom_call.1} parent=1 // pred_fallthru
      _
    // Predicated region
    $region42: #{tpu_custom_call.1} parent=1 // pred_check
      _
    $region43: #{tpu_custom_call.1} parent=1 // pred_check_branch
      %40 = sbr.rel (0) target = $region45
    $region44: #{tpu_custom_call.1} parent=1 // pred_region
      _
    $region45: #{tpu_custom_call.1} parent=1 // pred_fallthru
      _
    // Predicated region
    $region46: #{tpu_custom_call.1} parent=1 // pred_check
      _
    $region47: #{tpu_custom_call.1} parent=1 // pred_check_branch
      %42 = sbr.rel (0) target = $region49
    $region48: #{tpu_custom_call.1} parent=1 // pred_region
      _
    $region49: #{tpu_custom_call.1} parent=1 // pred_fallthru
      _
    // Predicated region
    $region50: #{tpu_custom_call.1} parent=1 // pred_check
      _
    $region51: #{tpu_custom_call.1} parent=1 // pred_check_branch
      %44 = sbr.rel (0) target = $region53
    $region52: #{tpu_custom_call.1} parent=1 // pred_region
      _
    $region53: #{tpu_custom_call.1} parent=1 // pred_fallthru
      _
    %v46 = vld [vmem:[%s0] sm:$0xf]
    %v47 = vld [vmem:[%s0 + $0x4] sm:$0xf]
    %v48 = vunpack.c.l.bf16 %v46
    %v49 = vunpack.c.l.bf16 %v47
    %v50 = vld [vmem:[%s1] sm:$0x1]
    %v51 = vld [vmem:[%s2] sm:$0x1]
    %vm52 = vcmask 261120
    %v53 = vsel %vm52, %v48, 0.0
    %54 = vadd.xlane.f32.xlu0 %v53
    %v55 = vpop.xlane.xlu0 %54
    %v56 = vsel %vm52, %v49, 0.0
    %57 = vadd.xlane.f32.xlu0 %v56
    %v58 = vpop.xlane.xlu0 %57
    %v59 = vrcp.pop 32.0
    %v60 = vmul.f32 %v55, %v59
    %v61 = vmul.f32 %v58, %v59
    %v62 = vsub.f32 %v48, %v60
    %v63 = vsub.f32 %v49, %v61
    %v64 = vmul.f32 %v62, %v62
    %v65 = vmul.f32 %v63, %v63
    %v66 = vsel %vm52, %v64, 0.0
    %67 = vadd.xlane.f32.xlu0 %v66
    %v68 = vpop.xlane.xlu0 %67
    %v69 = vsel %vm52, %v65, 0.0
    %70 = vadd.xlane.f32.xlu0 %v69
    %v71 = vpop.xlane.xlu0 %70
    %v72 = vmul.f32 %v68, %v59
    %v73 = vmul.f32 %v71, %v59
    %v74 = vadd.f32 %v72, 1e-05
    %v75 = vadd.f32 %v73, 1e-05
    %v76 = vrsqrt.pop %v74
    %v77 = vrsqrt.pop %v75
    %v78 = vmul.f32 %v62, %v76
    %v79 = vmul.f32 %v63, %v77
    %v81 = vlaneseq
    %v82 = vshrl.u32 %v81, 7
    %v83 = vsub.s32 0, %v82
    %v84 = vrot.slane %v50, %v83
    %v86 = vmul.f32 %v78, %v84
    %v87 = vmul.f32 %v79, %v84
    %v89 = vlaneseq
    %v90 = vshrl.u32 %v89, 7
    %v91 = vsub.s32 0, %v90
    %v92 = vrot.slane %v51, %v91
    %v94 = vadd.f32 %v86, %v92
    %v95 = vadd.f32 %v87, %v92
    %v96 = vpack.c.bf16 %v95, %v94
    %v97 = vld [vmem:[%s3] sm:$0xf]
    %v98 = vld [vmem:[%s3 + $0x4] sm:$0xf]
    %v99 = vld [vmem:[%s3 + $0x8] sm:$0xf]
    %v100 = vld [vmem:[%s3 + $0xc] sm:$0xf]
    %v101 = vld [vmem:[%s4] sm:$0x1]
    %v103 = vlaneseq
    %v104 = vshrl.u32 %v103, 7
    %v105 = vsub.s32 0, %v104
    %v106 = vrot.slane %v101, %v105
    %v112 = vunpack.c.l.b16 %v97
    %v113 = vunpack.c.l.b16 %v98
    %v114 = vunpack.c.l.b16 %v99
    %v115 = vunpack.c.l.b16 %v100
    %v116 = vpack.c.b16 %v113, %v112
    %v117 = vpack.c.b16 %v115, %v114
    %v121 = vsel %vm52, %v96, 0
    %123 = vmatprep.subr.bf16.mxu0 0
    %124 = vmatpush1.bf16.msra.mxu0 %v116
    %125 = vmatprep.subr.bf16.mxu0 0
    %126 = vmatpush1.bf16.msra.mxu0 %v117
    %127 = vmatprep.subr.bf16.mxu0 0
    %128 = vmatpush1.bf16.msra.mxu0 0
    %129 = vmatprep.subr.bf16.mxu0 0
    %130 = vmatpush1.bf16.msra.mxu0 0
    %131 = vmatprep.subr.bf16.mxu0 0
    %132 = vmatpush1.bf16.msra.mxu0 0
    %133 = vmatprep.subr.bf16.mxu0 0
    %134 = vmatpush1.bf16.msra.mxu0 0
    %135 = vmatprep.subr.bf16.mxu0 0
    %136 = vmatpush1.bf16.msra.mxu0 0
    %137 = vmatprep.subr.bf16.mxu0 0
    %138 = vmatpush1.bf16.msra.mxu0 0
    %139 = vmatprep.subr.bf16.mxu0 0
    %140 = vmatpush1.bf16.msra.mxu0 0
    %141 = vmatprep.subr.bf16.mxu0 0
    %142 = vmatpush1.bf16.msra.mxu0 0
    %143 = vmatprep.subr.bf16.mxu0 0
    %144 = vmatpush1.bf16.msra.mxu0 0
    %145 = vmatprep.subr.bf16.mxu0 0
    %146 = vmatpush1.bf16.msra.mxu0 0
    %147 = vmatprep.subr.bf16.mxu0 0
    %148 = vmatpush1.bf16.msra.mxu0 0
    %149 = vmatprep.subr.bf16.mxu0 0
    %150 = vmatpush1.bf16.msra.mxu0 0
    %151 = vmatprep.subr.bf16.mxu0 0
    %152 = vmatpush1.bf16.msra.mxu0 0
    %153 = vmatprep.subr.bf16.mxu0 0
    %154 = vmatpush1.bf16.msra.mxu0 0
    %155 = vmatprep.mubr.bf16.mxu0 0
    %156 = vmatmul.mubr.bf16.gmra.mrb[0].mxu0 %v121
    %v157 = vpop.f32.mrb[0].mxu0
    %v158 = vadd.f32 %v106, %v157
    %v159 = vpop.f32.mrb[0].mxu0
    %v160 = vpop.f32.mrb[0].mxu0
    %v161 = vadd.f32 %v106, %v160
    %v162 = vpop.f32.mrb[0].mxu0
    %163 = vdwg.mxu0
    %v164 = vpack.c.bf16 %v161, %v158
    %v166 = vunpack.c.l.b16 %v164
    %v167 = vunpack.c.h.b16 %v164
    %v168 = vpack.c.b16 %v166, %v166
    %v169 = vpack.c.b16 %v167, %v167
    %vm172 = vcmask 781312
    %173 = vst.msk [vmem:[#allocation2] sm:$0xf] %vm172, %v168
    %174 = vst.msk [vmem:[#allocation2 + $0x4] sm:$0xf] %vm172, %v169
    loop: start=0, step=1, limit=2
    $region54: #{tpu_custom_call.1} parent=1 // loop_pre_header
      _
    $region55: #{tpu_custom_call.1} parent=1 // loop_header
      %s176 = sphi 0, %s180
      %p177 = scmp.ge.s32.totalorder %s176, 2
    $region56: #{tpu_custom_call.1} parent=1 // loop_header_branch
      %179 = sbr.rel (%p177) target = $region60
    $region57: #{tpu_custom_call.1} parent=1 // loop_body
      %s181 = smul.addr %s176, 4
      %s182 = scalar_lea.vmem [#allocation2], %s181
      %v183 = vld [vmem:[%s182] sm:$0xf]
      %v185 = vunpack.c.l.b16 %v183
      %v186 = vpack.c.b16 %v185, %v185
      %187 = vrot.lane.b32.xlu0 %v186, 96
      %v188 = vpop.permute.xlu0 %187
      %vm189 = vcmask 64512
      %v191 = vsel %vm189, %v183, 0
      %v194 = vsel %vm189, %v188, 0
      %196 = vmatprep.subr.bf16.mxu0 0
      %197 = vmatpush1.bf16.xpose.msra.mxu0 %v194
      %198 = vmatprep.subr.bf16.mxu0 0
      %199 = vmatpush1.bf16.xpose.msra.mxu0 0
      %200 = vmatprep.subr.bf16.mxu0 0
      %201 = vmatpush1.bf16.xpose.msra.mxu0 0
      %202 = vmatprep.subr.bf16.mxu0 0
      %203 = vmatpush1.bf16.xpose.msra.mxu0 0
      %204 = vmatprep.subr.bf16.mxu0 0
      %205 = vmatpush1.bf16.xpose.msra.mxu0 0
      %206 = vmatprep.subr.bf16.mxu0 0
      %207 = vmatpush1.bf16.xpose.msra.mxu0 0
      %208 = vmatprep.subr.bf16.mxu0 0
      %209 = vmatpush1.bf16.xpose.msra.mxu0 0
      %210 = vmatprep.subr.bf16.mxu0 0
      %211 = vmatpush1.bf16.xpose.msra.mxu0 0
      %212 = vmatprep.subr.bf16.mxu0 0
      %213 = vmatpush1.bf16.xpose.msra.mxu0 0
      %214 = vmatprep.subr.bf16.mxu0 0
      %215 = vmatpush1.bf16.xpose.msra.mxu0 0
      %216 = vmatprep.subr.bf16.mxu0 0
      %217 = vmatpush1.bf16.xpose.msra.mxu0 0
      %218 = vmatprep.subr.bf16.mxu0 0
      %219 = vmatpush1.bf16.xpose.msra.mxu0 0
      %220 = vmatprep.subr.bf16.mxu0 0
      %221 = vmatpush1.bf16.xpose.msra.mxu0 0
      %222 = vmatprep.subr.bf16.mxu0 0
      %223 = vmatpush1.bf16.xpose.msra.mxu0 0
      %224 = vmatprep.subr.bf16.mxu0 0
      %225 = vmatpush1.bf16.xpose.msra.mxu0 0
      %226 = vmatprep.subr.bf16.mxu0 0
      %227 = vmatpush1.bf16.xpose.msra.mxu0 0
      %228 = vmatprep.mubr.bf16.mxu0 0
      %229 = vmatmul.mubr.bf16.gmra.mrb[0].mxu0 %v191
      %v230 = vpop.f32.mrb[0].mxu0
      %v231 = vadd.f32 0.0, %v230
      %v232 = vpop.f32.mrb[0].mxu0
      %v233 = vpop.f32.mrb[0].mxu0
      %v234 = vpop.f32.mrb[0].mxu0
      %235 = vdwg.mxu0
      %v236 = vsel %vm189, %v231, -inf
      %237 = vmax.xlane.f32.xlu0 %v236
      %v238 = vpop.xlane.xlu0 %237
      %v239 = vsub.f32 %v231, %v238
      %v240 = vmul.f32 %v239, 1.442695
      %v241 = vpow.pop %v240
      %v242 = vsel %vm189, %v241, 0.0
      %243 = vadd.xlane.f32.xlu0 %v242
      %v244 = vpop.xlane.xlu0 %243
      %v245 = vrcp.pop %v244
      %v246 = vmul.f32 %v241, %v245
      %v247 = vpack.c.bf16 %v246, %v246
      %248 = vrot.lane.b32.xlu0 %v186, 64
      %v249 = vpop.permute.xlu0 %248
      %v251 = vsel %vm189, %v247, 0
      %vm253 = vcmask 1043456
      %v255 = vsel %vm253, %v249, 0
      %257 = vmatprep.subr.bf16.mxu0 0
      %258 = vmatpush1.bf16.msra.mxu0 %v255
      %259 = vmatprep.subr.bf16.mxu0 0
      %260 = vmatpush1.bf16.msra.mxu0 0
      %261 = vmatprep.subr.bf16.mxu0 0
      %262 = vmatpush1.bf16.msra.mxu0 0
      %263 = vmatprep.subr.bf16.mxu0 0
      %264 = vmatpush1.bf16.msra.mxu0 0
      %265 = vmatprep.subr.bf16.mxu0 0
      %266 = vmatpush1.bf16.msra.mxu0 0
      %267 = vmatprep.subr.bf16.mxu0 0
      %268 = vmatpush1.bf16.msra.mxu0 0
      %269 = vmatprep.subr.bf16.mxu0 0
      %270 = vmatpush1.bf16.msra.mxu0 0
      %271 = vmatprep.subr.bf16.mxu0 0
      %272 = vmatpush1.bf16.msra.mxu0 0
      %273 = vmatprep.subr.bf16.mxu0 0
      %274 = vmatpush1.bf16.msra.mxu0 0
      %275 = vmatprep.subr.bf16.mxu0 0
      %276 = vmatpush1.bf16.msra.mxu0 0
      %277 = vmatprep.subr.bf16.mxu0 0
      %278 = vmatpush1.bf16.msra.mxu0 0
      %279 = vmatprep.subr.bf16.mxu0 0
      %280 = vmatpush1.bf16.msra.mxu0 0
      %281 = vmatprep.subr.bf16.mxu0 0
      %282 = vmatpush1.bf16.msra.mxu0 0
      %283 = vmatprep.subr.bf16.mxu0 0
      %284 = vmatpush1.bf16.msra.mxu0 0
      %285 = vmatprep.subr.bf16.mxu0 0
      %286 = vmatpush1.bf16.msra.mxu0 0
      %287 = vmatprep.subr.bf16.mxu0 0
      %288 = vmatpush1.bf16.msra.mxu0 0
      %289 = vmatprep.mubr.bf16.mxu0 0
      %290 = vmatmul.mubr.bf16.gmra.mrb[0].mxu0 %v251
      %v291 = vpop.f32.mrb[0].mxu0
      %v292 = vadd.f32 0.0, %v291
      %v293 = vpop.f32.mrb[0].mxu0
      %v294 = vpop.f32.mrb[0].mxu0
      %v295 = vpop.f32.mrb[0].mxu0
      %296 = vdwg.mxu0
      %v297 = vpack.c.bf16 %v292, %v292
      %s298 = smul.addr %s176, 4
      %s299 = scalar_lea.vmem [#allocation3], %s298
      %vm300 = vcmask 60416
      %301 = vst.msk [vmem:[%s299] sm:$0xf] %vm300, %v297
      %302 = vrot.lane.b32.xlu0 %v186, 120
      %v303 = vpop.permute.xlu0 %302
      %304 = vrot.lane.b32.xlu0 %v186, 88
      %v305 = vpop.permute.xlu0 %304
      %v307 = vsel %vm189, %v303, 0
      %v310 = vsel %vm189, %v305, 0
      %312 = vmatprep.subr.bf16.mxu0 0
      %313 = vmatpush1.bf16.xpose.msra.mxu0 %v310
      %314 = vmatprep.subr.bf16.mxu0 0
      %315 = vmatpush1.bf16.xpose.msra.mxu0 0
      %316 = vmatprep.subr.bf16.mxu0 0
      %317 = vmatpush1.bf16.xpose.msra.mxu0 0
      %318 = vmatprep.subr.bf16.mxu0 0
      %319 = vmatpush1.bf16.xpose.msra.mxu0 0
      %320 = vmatprep.subr.bf16.mxu0 0
      %321 = vmatpush1.bf16.xpose.msra.mxu0 0
      %322 = vmatprep.subr.bf16.mxu0 0
      %323 = vmatpush1.bf16.xpose.msra.mxu0 0
      %324 = vmatprep.subr.bf16.mxu0 0
      %325 = vmatpush1.bf16.xpose.msra.mxu0 0
      %326 = vmatprep.subr.bf16.mxu0 0
      %327 = vmatpush1.bf16.xpose.msra.mxu0 0
      %328 = vmatprep.subr.bf16.mxu0 0
      %329 = vmatpush1.bf16.xpose.msra.mxu0 0
      %330 = vmatprep.subr.bf16.mxu0 0
      %331 = vmatpush1.bf16.xpose.msra.mxu0 0
      %332 = vmatprep.subr.bf16.mxu0 0
      %333 = vmatpush1.bf16.xpose.msra.mxu0 0
      %334 = vmatprep.subr.bf16.mxu0 0
      %335 = vmatpush1.bf16.xpose.msra.mxu0 0
      %336 = vmatprep.subr.bf16.mxu0 0
      %337 = vmatpush1.bf16.xpose.msra.mxu0 0
      %338 = vmatprep.subr.bf16.mxu0 0
      %339 = vmatpush1.bf16.xpose.msra.mxu0 0
      %340 = vmatprep.subr.bf16.mxu0 0
      %341 = vmatpush1.bf16.xpose.msra.mxu0 0
      %342 = vmatprep.subr.bf16.mxu0 0
      %343 = vmatpush1.bf16.xpose.msra.mxu0 0
      %344 = vmatprep.mubr.bf16.mxu0 0
      %345 = vmatmul.mubr.bf16.gmra.mrb[0].mxu0 %v307
      %v346 = vpop.f32.mrb[0].mxu0
      %v347 = vadd.f32 0.0, %v346
      %v348 = vpop.f32.mrb[0].mxu0
      %v349 = vpop.f32.mrb[0].mxu0
      %v350 = vpop.f32.mrb[0].mxu0
      %351 = vdwg.mxu0
      %v352 = vsel %vm189, %v347, -inf
      %353 = vmax.xlane.f32.xlu0 %v352
      %v354 = vpop.xlane.xlu0 %353
      %v355 = vsub.f32 %v347, %v354
      %v356 = vmul.f32 %v355, 1.442695
      %v357 = vpow.pop %v356
      %v358 = vsel %vm189, %v357, 0.0
      %359 = vadd.xlane.f32.xlu0 %v358
      %v360 = vpop.xlane.xlu0 %359
      %v361 = vrcp.pop %v360
      %v362 = vmul.f32 %v357, %v361
      %v363 = vpack.c.bf16 %v362, %v362
      %364 = vrot.lane.b32.xlu0 %v186, 56
      %v365 = vpop.permute.xlu0 %364
      %v367 = vsel %vm189, %v363, 0
      %v370 = vsel %vm253, %v365, 0
      %372 = vmatprep.subr.bf16.mxu0 0
      %373 = vmatpush1.bf16.msra.mxu0 %v370
      %374 = vmatprep.subr.bf16.mxu0 0
      %375 = vmatpush1.bf16.msra.mxu0 0
      %376 = vmatprep.subr.bf16.mxu0 0
      %377 = vmatpush1.bf16.msra.mxu0 0
      %378 = vmatprep.subr.bf16.mxu0 0
      %379 = vmatpush1.bf16.msra.mxu0 0
      %380 = vmatprep.subr.bf16.mxu0 0
      %381 = vmatpush1.bf16.msra.mxu0 0
      %382 = vmatprep.subr.bf16.mxu0 0
      %383 = vmatpush1.bf16.msra.mxu0 0
      %384 = vmatprep.subr.bf16.mxu0 0
      %385 = vmatpush1.bf16.msra.mxu0 0
      %386 = vmatprep.subr.bf16.mxu0 0
      %387 = vmatpush1.bf16.msra.mxu0 0
      %388 = vmatprep.subr.bf16.mxu0 0
      %389 = vmatpush1.bf16.msra.mxu0 0
      %390 = vmatprep.subr.bf16.mxu0 0
      %391 = vmatpush1.bf16.msra.mxu0 0
      %392 = vmatprep.subr.bf16.mxu0 0
      %393 = vmatpush1.bf16.msra.mxu0 0
      %394 = vmatprep.subr.bf16.mxu0 0
      %395 = vmatpush1.bf16.msra.mxu0 0
      %396 = vmatprep.subr.bf16.mxu0 0
      %397 = vmatpush1.bf16.msra.mxu0 0
      %398 = vmatprep.subr.bf16.mxu0 0
      %399 = vmatpush1.bf16.msra.mxu0 0
      %400 = vmatprep.subr.bf16.mxu0 0
      %401 = vmatpush1.bf16.msra.mxu0 0
      %402 = vmatprep.subr.bf16.mxu0 0
      %403 = vmatpush1.bf16.msra.mxu0 0
      %404 = vmatprep.mubr.bf16.mxu0 0
      %405 = vmatmul.mubr.bf16.gmra.mrb[0].mxu0 %v367
      %v406 = vpop.f32.mrb[0].mxu0
      %v407 = vadd.f32 0.0, %v406
      %v408 = vpop.f32.mrb[0].mxu0
      %v409 = vpop.f32.mrb[0].mxu0
      %v410 = vpop.f32.mrb[0].mxu0
      %411 = vdwg.mxu0
      %v412 = vpack.c.bf16 %v407, %v407
      %v414 = vunpack.c.l.b16 %v412
      %v415 = vpack.c.b16 %v414, %v414
      %416 = vrot.lane.b32.xlu0 %v415, 8
      %v417 = vpop.permute.xlu0 %416
      %vm419 = vcmask 126016
      %420 = vst.msk [vmem:[%s299] sm:$0xf] %vm419, %v417
      %421 = vrot.lane.b32.xlu0 %v186, 112
      %v422 = vpop.permute.xlu0 %421
      %423 = vrot.lane.b32.xlu0 %v186, 80
      %v424 = vpop.permute.xlu0 %423
      %v426 = vsel %vm189, %v422, 0
      %v429 = vsel %vm189, %v424, 0
      %431 = vmatprep.subr.bf16.mxu0 0
      %432 = vmatpush1.bf16.xpose.msra.mxu0 %v429
      %433 = vmatprep.subr.bf16.mxu0 0
      %434 = vmatpush1.bf16.xpose.msra.mxu0 0
      %435 = vmatprep.subr.bf16.mxu0 0
      %436 = vmatpush1.bf16.xpose.msra.mxu0 0
      %437 = vmatprep.subr.bf16.mxu0 0
      %438 = vmatpush1.bf16.xpose.msra.mxu0 0
      %439 = vmatprep.subr.bf16.mxu0 0
      %440 = vmatpush1.bf16.xpose.msra.mxu0 0
      %441 = vmatprep.subr.bf16.mxu0 0
      %442 = vmatpush1.bf16.xpose.msra.mxu0 0
      %443 = vmatprep.subr.bf16.mxu0 0
      %444 = vmatpush1.bf16.xpose.msra.mxu0 0
      %445 = vmatprep.subr.bf16.mxu0 0
      %446 = vmatpush1.bf16.xpose.msra.mxu0 0
      %447 = vmatprep.subr.bf16.mxu0 0
      %448 = vmatpush1.bf16.xpose.msra.mxu0 0
      %449 = vmatprep.subr.bf16.mxu0 0
      %450 = vmatpush1.bf16.xpose.msra.mxu0 0
      %451 = vmatprep.subr.bf16.mxu0 0
      %452 = vmatpush1.bf16.xpose.msra.mxu0 0
      %453 = vmatprep.subr.bf16.mxu0 0
      %454 = vmatpush1.bf16.xpose.msra.mxu0 0
      %455 = vmatprep.subr.bf16.mxu0 0
      %456 = vmatpush1.bf16.xpose.msra.mxu0 0
      %457 = vmatprep.subr.bf16.mxu0 0
      %458 = vmatpush1.bf16.xpose.msra.mxu0 0
      %459 = vmatprep.subr.bf16.mxu0 0
      %460 = vmatpush1.bf16.xpose.msra.mxu0 0
      %461 = vmatprep.subr.bf16.mxu0 0
      %462 = vmatpush1.bf16.xpose.msra.mxu0 0
      %463 = vmatprep.mubr.bf16.mxu0 0
      %464 = vmatmul.mubr.bf16.gmra.mrb[0].mxu0 %v426
      %v465 = vpop.f32.mrb[0].mxu0
      %v466 = vadd.f32 0.0, %v465
      %v467 = vpop.f32.mrb[0].mxu0
      %v468 = vpop.f32.mrb[0].mxu0
      %v469 = vpop.f32.mrb[0].mxu0
      %470 = vdwg.mxu0
      %v471 = vsel %vm189, %v466, -inf
      %472 = vmax.xlane.f32.xlu0 %v471
      %v473 = vpop.xlane.xlu0 %472
      %v474 = vsub.f32 %v466, %v473
      %v475 = vmul.f32 %v474, 1.442695
      %v476 = vpow.pop %v475
      %v477 = vsel %vm189, %v476, 0.0
      %478 = vadd.xlane.f32.xlu0 %v477
      %v479 = vpop.xlane.xlu0 %478
      %v480 = vrcp.pop %v479
      %v481 = vmul.f32 %v476, %v480
      %v482 = vpack.c.bf16 %v481, %v481
      %483 = vrot.lane.b32.xlu0 %v186, 48
      %v484 = vpop.permute.xlu0 %483
      %v486 = vsel %vm189, %v482, 0
      %v489 = vsel %vm253, %v484, 0
      %491 = vmatprep.subr.bf16.mxu0 0
      %492 = vmatpush1.bf16.msra.mxu0 %v489
      %493 = vmatprep.subr.bf16.mxu0 0
      %494 = vmatpush1.bf16.msra.mxu0 0
      %495 = vmatprep.subr.bf16.mxu0 0
      %496 = vmatpush1.bf16.msra.mxu0 0
      %497 = vmatprep.subr.bf16.mxu0 0
      %498 = vmatpush1.bf16.msra.mxu0 0
      %499 = vmatprep.subr.bf16.mxu0 0
      %500 = vmatpush1.bf16.msra.mxu0 0
      %501 = vmatprep.subr.bf16.mxu0 0
      %502 = vmatpush1.bf16.msra.mxu0 0
      %503 = vmatprep.subr.bf16.mxu0 0
      %504 = vmatpush1.bf16.msra.mxu0 0
      %505 = vmatprep.subr.bf16.mxu0 0
      %506 = vmatpush1.bf16.msra.mxu0 0
      %507 = vmatprep.subr.bf16.mxu0 0
      %508 = vmatpush1.bf16.msra.mxu0 0
      %509 = vmatprep.subr.bf16.mxu0 0
      %510 = vmatpush1.bf16.msra.mxu0 0
      %511 = vmatprep.subr.bf16.mxu0 0
      %512 = vmatpush1.bf16.msra.mxu0 0
      %513 = vmatprep.subr.bf16.mxu0 0
      %514 = vmatpush1.bf16.msra.mxu0 0
      %515 = vmatprep.subr.bf16.mxu0 0
      %516 = vmatpush1.bf16.msra.mxu0 0
      %517 = vmatprep.subr.bf16.mxu0 0
      %518 = vmatpush1.bf16.msra.mxu0 0
      %519 = vmatprep.subr.bf16.mxu0 0
      %520 = vmatpush1.bf16.msra.mxu0 0
      %521 = vmatprep.subr.bf16.mxu0 0
      %522 = vmatpush1.bf16.msra.mxu0 0
      %523 = vmatprep.mubr.bf16.mxu0 0
      %524 = vmatmul.mubr.bf16.gmra.mrb[0].mxu0 %v486
      %v525 = vpop.f32.mrb[0].mxu0
      %v526 = vadd.f32 0.0, %v525
      %v527 = vpop.f32.mrb[0].mxu0
      %v528 = vpop.f32.mrb[0].mxu0
      %v529 = vpop.f32.mrb[0].mxu0
      %530 = vdwg.mxu0
      %v531 = vpack.c.bf16 %v526, %v526
      %v533 = vunpack.c.l.b16 %v531
      %v534 = vpack.c.b16 %v533, %v533
      %535 = vrot.lane.b32.xlu0 %v534, 16
      %v536 = vpop.permute.xlu0 %535
      %vm538 = vcmask 191616
      %539 = vst.msk [vmem:[%s299] sm:$0xf] %vm538, %v536
      %540 = vrot.lane.b32.xlu0 %v186, 104
      %v541 = vpop.permute.xlu0 %540
      %542 = vrot.lane.b32.xlu0 %v186, 72
      %v543 = vpop.permute.xlu0 %542
      %v545 = vsel %vm189, %v541, 0
      %v548 = vsel %vm189, %v543, 0
      %550 = vmatprep.subr.bf16.mxu0 0
      %551 = vmatpush1.bf16.xpose.msra.mxu0 %v548
      %552 = vmatprep.subr.bf16.mxu0 0
      %553 = vmatpush1.bf16.xpose.msra.mxu0 0
      %554 = vmatprep.subr.bf16.mxu0 0
      %555 = vmatpush1.bf16.xpose.msra.mxu0 0
      %556 = vmatprep.subr.bf16.mxu0 0
      %557 = vmatpush1.bf16.xpose.msra.mxu0 0
      %558 = vmatprep.subr.bf16.mxu0 0
      %559 = vmatpush1.bf16.xpose.msra.mxu0 0
      %560 = vmatprep.subr.bf16.mxu0 0
      %561 = vmatpush1.bf16.xpose.msra.mxu0 0
      %562 = vmatprep.subr.bf16.mxu0 0
      %563 = vmatpush1.bf16.xpose.msra.mxu0 0
      %564 = vmatprep.subr.bf16.mxu0 0
      %565 = vmatpush1.bf16.xpose.msra.mxu0 0
      %566 = vmatprep.subr.bf16.mxu0 0
      %567 = vmatpush1.bf16.xpose.msra.mxu0 0
      %568 = vmatprep.subr.bf16.mxu0 0
      %569 = vmatpush1.bf16.xpose.msra.mxu0 0
      %570 = vmatprep.subr.bf16.mxu0 0
      %571 = vmatpush1.bf16.xpose.msra.mxu0 0
      %572 = vmatprep.subr.bf16.mxu0 0
      %573 = vmatpush1.bf16.xpose.msra.mxu0 0
      %574 = vmatprep.subr.bf16.mxu0 0
      %575 = vmatpush1.bf16.xpose.msra.mxu0 0
      %576 = vmatprep.subr.bf16.mxu0 0
      %577 = vmatpush1.bf16.xpose.msra.mxu0 0
      %578 = vmatprep.subr.bf16.mxu0 0
      %579 = vmatpush1.bf16.xpose.msra.mxu0 0
      %580 = vmatprep.subr.bf16.mxu0 0
      %581 = vmatpush1.bf16.xpose.msra.mxu0 0
      %582 = vmatprep.mubr.bf16.mxu0 0
      %583 = vmatmul.mubr.bf16.gmra.mrb[0].mxu0 %v545
      %v584 = vpop.f32.mrb[0].mxu0
      %v585 = vadd.f32 0.0, %v584
      %v586 = vpop.f32.mrb[0].mxu0
      %v587 = vpop.f32.mrb[0].mxu0
      %v588 = vpop.f32.mrb[0].mxu0
      %589 = vdwg.mxu0
      %v590 = vsel %vm189, %v585, -inf
      %591 = vmax.xlane.f32.xlu0 %v590
      %v592 = vpop.xlane.xlu0 %591
      %v593 = vsub.f32 %v585, %v592
      %v594 = vmul.f32 %v593, 1.442695
      %v595 = vpow.pop %v594
      %v596 = vsel %vm189, %v595, 0.0
      %597 = vadd.xlane.f32.xlu0 %v596
      %v598 = vpop.xlane.xlu0 %597
      %v599 = vrcp.pop %v598
      %v600 = vmul.f32 %v595, %v599
      %v601 = vpack.c.bf16 %v600, %v600
      %602 = vrot.lane.b32.xlu0 %v186, 40
      %v603 = vpop.permute.xlu0 %602
      %v605 = vsel %vm189, %v601, 0
      %v608 = vsel %vm253, %v603, 0
      %610 = vmatprep.subr.bf16.mxu0 0
      %611 = vmatpush1.bf16.msra.mxu0 %v608
      %612 = vmatprep.subr.bf16.mxu0 0
      %613 = vmatpush1.bf16.msra.mxu0 0
      %614 = vmatprep.subr.bf16.mxu0 0
      %615 = vmatpush1.bf16.msra.mxu0 0
      %616 = vmatprep.subr.bf16.mxu0 0
      %617 = vmatpush1.bf16.msra.mxu0 0
      %618 = vmatprep.subr.bf16.mxu0 0
      %619 = vmatpush1.bf16.msra.mxu0 0
      %620 = vmatprep.subr.bf16.mxu0 0
      %621 = vmatpush1.bf16.msra.mxu0 0
      %622 = vmatprep.subr.bf16.mxu0 0
      %623 = vmatpush1.bf16.msra.mxu0 0
      %624 = vmatprep.subr.bf16.mxu0 0
      %625 = vmatpush1.bf16.msra.mxu0 0
      %626 = vmatprep.subr.bf16.mxu0 0
      %627 = vmatpush1.bf16.msra.mxu0 0
      %628 = vmatprep.subr.bf16.mxu0 0
      %629 = vmatpush1.bf16.msra.mxu0 0
      %630 = vmatprep.subr.bf16.mxu0 0
      %631 = vmatpush1.bf16.msra.mxu0 0
      %632 = vmatprep.subr.bf16.mxu0 0
      %633 = vmatpush1.bf16.msra.mxu0 0
      %634 = vmatprep.subr.bf16.mxu0 0
      %635 = vmatpush1.bf16.msra.mxu0 0
      %636 = vmatprep.subr.bf16.mxu0 0
      %637 = vmatpush1.bf16.msra.mxu0 0
      %638 = vmatprep.subr.bf16.mxu0 0
      %639 = vmatpush1.bf16.msra.mxu0 0
      %640 = vmatprep.subr.bf16.mxu0 0
      %641 = vmatpush1.bf16.msra.mxu0 0
      %642 = vmatprep.mubr.bf16.mxu0 0
      %643 = vmatmul.mubr.bf16.gmra.mrb[0].mxu0 %v605
      %v644 = vpop.f32.mrb[0].mxu0
      %v645 = vadd.f32 0.0, %v644
      %v646 = vpop.f32.mrb[0].mxu0
      %v647 = vpop.f32.mrb[0].mxu0
      %v648 = vpop.f32.mrb[0].mxu0
      %649 = vdwg.mxu0
      %v650 = vpack.c.bf16 %v645, %v645
      %v652 = vunpack.c.l.b16 %v650
      %v653 = vpack.c.b16 %v652, %v652
      %654 = vrot.lane.b32.xlu0 %v653, 24
      %v655 = vpop.permute.xlu0 %654
      %vm657 = vcmask 257216
      %658 = vst.msk [vmem:[%s299] sm:$0xf] %vm657, %v655
    $region58: #{tpu_custom_call.1} parent=1 // loop_footer
      %s180 = sadd.s32 1, %s176
    $region59: #{tpu_custom_call.1} parent=1 // loop_footer_branch
      %175 = sbr.rel target = $region55
    $region60: #{tpu_custom_call.1} parent=1 // loop_exit
      _
    %v659 = vld [vmem:[#allocation3] sm:$0xf]
    %v660 = vld [vmem:[#allocation3 + $0x4] sm:$0xf]
    %v661 = vld [vmem:[%s5] sm:$0xf]
    %v662 = vld [vmem:[%s5 + $0x4] sm:$0xf]
    %v663 = vld [vmem:[%s5 + $0x8] sm:$0xf]
    %v664 = vld [vmem:[%s5 + $0xc] sm:$0xf]
    %v667 = vunpack.c.l.b16 %v659
    %v668 = vunpack.c.l.b16 %v660
    %v669 = vpack.c.b16 %v668, %v667
    %v674 = vunpack.c.l.b16 %v661
    %v675 = vunpack.c.l.b16 %v662
    %v676 = vunpack.c.l.b16 %v663
    %v677 = vunpack.c.l.b16 %v664
    %v678 = vpack.c.b16 %v675, %v674
    %v679 = vpack.c.b16 %v677, %v676
    %v683 = vsel %vm52, %v669, 0
    %685 = vmatprep.subr.bf16.mxu0 0
    %686 = vmatpush1.bf16.msra.mxu0 %v678
    %687 = vmatprep.subr.bf16.mxu0 0
    %688 = vmatpush1.bf16.msra.mxu0 %v679
    %689 = vmatprep.subr.bf16.mxu0 0
    %690 = vmatpush1.bf16.msra.mxu0 0
    %691 = vmatprep.subr.bf16.mxu0 0
    %692 = vmatpush1.bf16.msra.mxu0 0
    %693 = vmatprep.subr.bf16.mxu0 0
    %694 = vmatpush1.bf16.msra.mxu0 0
    %695 = vmatprep.subr.bf16.mxu0 0
    %696 = vmatpush1.bf16.msra.mxu0 0
    %697 = vmatprep.subr.bf16.mxu0 0
    %698 = vmatpush1.bf16.msra.mxu0 0
    %699 = vmatprep.subr.bf16.mxu0 0
    %700 = vmatpush1.bf16.msra.mxu0 0
    %701 = vmatprep.subr.bf16.mxu0 0
    %702 = vmatpush1.bf16.msra.mxu0 0
    %703 = vmatprep.subr.bf16.mxu0 0
    %704 = vmatpush1.bf16.msra.mxu0 0
    %705 = vmatprep.subr.bf16.mxu0 0
    %706 = vmatpush1.bf16.msra.mxu0 0
    %707 = vmatprep.subr.bf16.mxu0 0
    %708 = vmatpush1.bf16.msra.mxu0 0
    %709 = vmatprep.subr.bf16.mxu0 0
    %710 = vmatpush1.bf16.msra.mxu0 0
    %711 = vmatprep.subr.bf16.mxu0 0
    %712 = vmatpush1.bf16.msra.mxu0 0
    %713 = vmatprep.subr.bf16.mxu0 0
    %714 = vmatpush1.bf16.msra.mxu0 0
    %715 = vmatprep.subr.bf16.mxu0 0
    %716 = vmatpush1.bf16.msra.mxu0 0
    %717 = vmatprep.mubr.bf16.mxu0 0
    %718 = vmatmul.mubr.bf16.gmra.mrb[0].mxu0 %v683
    %v719 = vpop.f32.mrb[0].mxu0
    %v720 = vadd.f32 0.0, %v719
    %v721 = vpop.f32.mrb[0].mxu0
    %v722 = vpop.f32.mrb[0].mxu0
    %v723 = vadd.f32 0.0, %v722
    %v724 = vpop.f32.mrb[0].mxu0
    %725 = vdwg.mxu0
    %v726 = vadd.f32 %v48, %v720
    %v727 = vadd.f32 %v49, %v723
    %v728 = vld [vmem:[%s6] sm:$0x1]
    %v730 = vlaneseq
    %v731 = vshrl.u32 %v730, 7
    %v732 = vsub.s32 0, %v731
    %v733 = vrot.slane %v728, %v732
    %v735 = vadd.f32 %v726, %v733
    %v736 = vadd.f32 %v727, %v733
    %v737 = vld [vmem:[%s7] sm:$0x1]
    %v738 = vld [vmem:[%s8] sm:$0x1]
    %v739 = vsel %vm52, %v735, 0.0
    %740 = vadd.xlane.f32.xlu0 %v739
    %v741 = vpop.xlane.xlu0 %740
    %v742 = vsel %vm52, %v736, 0.0
    %743 = vadd.xlane.f32.xlu0 %v742
    %v744 = vpop.xlane.xlu0 %743
    %v745 = vmul.f32 %v741, %v59
    %v746 = vmul.f32 %v744, %v59
    %v747 = vsub.f32 %v735, %v745
    %v748 = vsub.f32 %v736, %v746
    %v749 = vmul.f32 %v747, %v747
    %v750 = vmul.f32 %v748, %v748
    %v751 = vsel %vm52, %v749, 0.0
    %752 = vadd.xlane.f32.xlu0 %v751
    %v753 = vpop.xlane.xlu0 %752
    %v754 = vsel %vm52, %v750, 0.0
    %755 = vadd.xlane.f32.xlu0 %v754
    %v756 = vpop.xlane.xlu0 %755
    %v757 = vmul.f32 %v753, %v59
    %v758 = vmul.f32 %v756, %v59
    %v759 = vadd.f32 %v757, 1e-05
    %v760 = vadd.f32 %v758, 1e-05
    %v761 = vrsqrt.pop %v759
    %v762 = vrsqrt.pop %v760
    %v763 = vmul.f32 %v747, %v761
    %v764 = vmul.f32 %v748, %v762
    %v766 = vlaneseq
    %v767 = vshrl.u32 %v766, 7
    %v768 = vsub.s32 0, %v767
    %v769 = vrot.slane %v737, %v768
    %v771 = vmul.f32 %v763, %v769
    %v772 = vmul.f32 %v764, %v769
    %v774 = vlaneseq
    %v775 = vshrl.u32 %v774, 7
    %v776 = vsub.s32 0, %v775
    %v777 = vrot.slane %v738, %v776
    %v779 = vadd.f32 %v771, %v777
    %v780 = vadd.f32 %v772, %v777
    %v781 = vpack.c.bf16 %v780, %v779
    %v782 = vld [vmem:[%s9] sm:$0xf]
    %v783 = vld [vmem:[%s9 + $0x4] sm:$0xf]
    %v784 = vld [vmem:[%s9 + $0x8] sm:$0xf]
    %v785 = vld [vmem:[%s9 + $0xc] sm:$0xf]
    %v786 = vld [vmem:[%s10] sm:$0x1]
    %v788 = vlaneseq
    %v789 = vshrl.u32 %v788, 7
    %v790 = vsub.s32 0, %v789
    %v791 = vrot.slane %v786, %v790
    %v797 = vunpack.c.l.b16 %v782
    %v798 = vunpack.c.l.b16 %v783
    %v799 = vunpack.c.l.b16 %v784
    %v800 = vunpack.c.l.b16 %v785
    %v801 = vpack.c.b16 %v798, %v797
    %v802 = vpack.c.b16 %v800, %v799
    %v806 = vsel %vm52, %v781, 0
    %808 = vmatprep.subr.bf16.mxu0 0
    %809 = vmatpush1.bf16.msra.mxu0 %v801
    %810 = vmatprep.subr.bf16.mxu0 0
    %811 = vmatpush1.bf16.msra.mxu0 %v802
    %812 = vmatprep.subr.bf16.mxu0 0
    %813 = vmatpush1.bf16.msra.mxu0 0
    %814 = vmatprep.subr.bf16.mxu0 0
    %815 = vmatpush1.bf16.msra.mxu0 0
    %816 = vmatprep.subr.bf16.mxu0 0
    %817 = vmatpush1.bf16.msra.mxu0 0
    %818 = vmatprep.subr.bf16.mxu0 0
    %819 = vmatpush1.bf16.msra.mxu0 0
    %820 = vmatprep.subr.bf16.mxu0 0
    %821 = vmatpush1.bf16.msra.mxu0 0
    %822 = vmatprep.subr.bf16.mxu0 0
    %823 = vmatpush1.bf16.msra.mxu0 0
    %824 = vmatprep.subr.bf16.mxu0 0
    %825 = vmatpush1.bf16.msra.mxu0 0
    %826 = vmatprep.subr.bf16.mxu0 0
    %827 = vmatpush1.bf16.msra.mxu0 0
    %828 = vmatprep.subr.bf16.mxu0 0
    %829 = vmatpush1.bf16.msra.mxu0 0
    %830 = vmatprep.subr.bf16.mxu0 0
    %831 = vmatpush1.bf16.msra.mxu0 0
    %832 = vmatprep.subr.bf16.mxu0 0
    %833 = vmatpush1.bf16.msra.mxu0 0
    %834 = vmatprep.subr.bf16.mxu0 0
    %835 = vmatpush1.bf16.msra.mxu0 0
    %836 = vmatprep.subr.bf16.mxu0 0
    %837 = vmatpush1.bf16.msra.mxu0 0
    %838 = vmatprep.subr.bf16.mxu0 0
    %839 = vmatpush1.bf16.msra.mxu0 0
    %840 = vmatprep.mubr.bf16.mxu0 0
    %841 = vmatmul.mubr.bf16.gmra.mrb[0].mxu0 %v806
    %v842 = vpop.f32.mrb[0].mxu0
    %v843 = vadd.f32 %v791, %v842
    %v844 = vpop.f32.mrb[0].mxu0
    %v845 = vpop.f32.mrb[0].mxu0
    %v846 = vadd.f32 %v791, %v845
    %v847 = vpop.f32.mrb[0].mxu0
    %848 = vdwg.mxu0
    %v849 = vmul.f32 %v843, 1.702
    %v850 = vmul.f32 %v846, 1.702
    %v851 = vxor.u32 %v849, 2147483648
    %v852 = vxor.u32 %v850, 2147483648
    %v853 = vmul.f32 %v851, 1.442695
    %v854 = vpow.pop %v853
    %v855 = vmul.f32 %v852, 1.442695
    %v856 = vpow.pop %v855
    %v857 = vadd.f32 %v854, 1.0
    %v858 = vadd.f32 %v856, 1.0
    %v859 = vrcp.pop %v857
    %v860 = vmul.f32 1.0, %v859
    %v861 = vrcp.pop %v858
    %v862 = vmul.f32 1.0, %v861
    %v863 = vmul.f32 %v843, %v860
    %v864 = vmul.f32 %v846, %v862
    %v865 = vpack.c.bf16 %v864, %v863
    %v866 = vld [vmem:[%s11] sm:$0xf]
    %v867 = vld [vmem:[%s11 + $0x4] sm:$0xf]
    %v868 = vld [vmem:[%s11 + $0x8] sm:$0xf]
    %v869 = vld [vmem:[%s11 + $0xc] sm:$0xf]
    %v870 = vld [vmem:[%s11 + $0x10] sm:$0xf]
    %v871 = vld [vmem:[%s11 + $0x14] sm:$0xf]
    %v872 = vld [vmem:[%s11 + $0x18] sm:$0xf]
    %v873 = vld [vmem:[%s11 + $0x1c] sm:$0xf]
    %v874 = vld [vmem:[%s11 + $0x20] sm:$0xf]
    %v875 = vld [vmem:[%s11 + $0x24] sm:$0xf]
    %v876 = vld [vmem:[%s11 + $0x28] sm:$0xf]
    %v877 = vld [vmem:[%s11 + $0x2c] sm:$0xf]
    %v878 = vld [vmem:[%s11 + $0x30] sm:$0xf]
    %v879 = vld [vmem:[%s11 + $0x34] sm:$0xf]
    %v880 = vld [vmem:[%s11 + $0x38] sm:$0xf]
    %v881 = vld [vmem:[%s11 + $0x3c] sm:$0xf]
    %v898 = vunpack.c.l.b16 %v866
    %v899 = vunpack.c.l.b16 %v867
    %v900 = vunpack.c.l.b16 %v868
    %v901 = vunpack.c.l.b16 %v869
    %v902 = vunpack.c.l.b16 %v870
    %v903 = vunpack.c.l.b16 %v871
    %v904 = vunpack.c.l.b16 %v872
    %v905 = vunpack.c.l.b16 %v873
    %v906 = vunpack.c.l.b16 %v874
    %v907 = vunpack.c.l.b16 %v875
    %v908 = vunpack.c.l.b16 %v876
    %v909 = vunpack.c.l.b16 %v877
    %v910 = vunpack.c.l.b16 %v878
    %v911 = vunpack.c.l.b16 %v879
    %v912 = vunpack.c.l.b16 %v880
    %v913 = vunpack.c.l.b16 %v881
    %v914 = vpack.c.b16 %v899, %v898
    %v915 = vpack.c.b16 %v901, %v900
    %v916 = vpack.c.b16 %v903, %v902
    %v917 = vpack.c.b16 %v905, %v904
    %v918 = vpack.c.b16 %v907, %v906
    %v919 = vpack.c.b16 %v909, %v908
    %v920 = vpack.c.b16 %v911, %v910
    %v921 = vpack.c.b16 %v913, %v912
    %930 = vmatprep.subr.bf16.mxu0 0
    %931 = vmatpush1.bf16.msra.mxu0 %v914
    %932 = vmatprep.subr.bf16.mxu0 0
    %933 = vmatpush1.bf16.msra.mxu0 %v915
    %934 = vmatprep.subr.bf16.mxu0 0
    %935 = vmatpush1.bf16.msra.mxu0 %v916
    %936 = vmatprep.subr.bf16.mxu0 0
    %937 = vmatpush1.bf16.msra.mxu0 %v917
    %938 = vmatprep.subr.bf16.mxu0 0
    %939 = vmatpush1.bf16.msra.mxu0 %v918
    %940 = vmatprep.subr.bf16.mxu0 0
    %941 = vmatpush1.bf16.msra.mxu0 %v919
    %942 = vmatprep.subr.bf16.mxu0 0
    %943 = vmatpush1.bf16.msra.mxu0 %v920
    %944 = vmatprep.subr.bf16.mxu0 0
    %945 = vmatpush1.bf16.msra.mxu0 %v921
    %946 = vmatprep.subr.bf16.mxu0 0
    %947 = vmatpush1.bf16.msra.mxu0 0
    %948 = vmatprep.subr.bf16.mxu0 0
    %949 = vmatpush1.bf16.msra.mxu0 0
    %950 = vmatprep.subr.bf16.mxu0 0
    %951 = vmatpush1.bf16.msra.mxu0 0
    %952 = vmatprep.subr.bf16.mxu0 0
    %953 = vmatpush1.bf16.msra.mxu0 0
    %954 = vmatprep.subr.bf16.mxu0 0
    %955 = vmatpush1.bf16.msra.mxu0 0
    %956 = vmatprep.subr.bf16.mxu0 0
    %957 = vmatpush1.bf16.msra.mxu0 0
    %958 = vmatprep.subr.bf16.mxu0 0
    %959 = vmatpush1.bf16.msra.mxu0 0
    %960 = vmatprep.subr.bf16.mxu0 0
    %961 = vmatpush1.bf16.msra.mxu0 0
    %962 = vmatprep.mubr.bf16.mxu0 0
    %963 = vmatmul.mubr.bf16.gmra.mrb[0].mxu0 %v865
    %v964 = vpop.f32.mrb[0].mxu0
    %v965 = vadd.f32 0.0, %v964
    %v966 = vpop.f32.mrb[0].mxu0
    %v967 = vpop.f32.mrb[0].mxu0
    %v968 = vadd.f32 0.0, %v967
    %v969 = vpop.f32.mrb[0].mxu0
    %970 = vdwg.mxu0
    %v971 = vadd.f32 %v735, %v965
    %v972 = vadd.f32 %v736, %v968
    %v973 = vld [vmem:[%s12] sm:$0x1]
    %v975 = vlaneseq
    %v976 = vshrl.u32 %v975, 7
    %v977 = vsub.s32 0, %v976
    %v978 = vrot.slane %v973, %v977
    %v980 = vadd.f32 %v971, %v978
    %v981 = vadd.f32 %v972, %v978
    %v982 = vpack.c.bf16 %v980, %v980
    %v983 = vpack.c.bf16 %v981, %v981
    %vm984 = vcmask 257024
    %985 = vst.msk [vmem:[#allocation4] sm:$0xf] %vm984, %v982
    %986 = vst.msk [vmem:[#allocation4 + $0x4] sm:$0xf] %vm984, %v983
    // Predicated region
    $region61: #{tpu_custom_call.1} parent=1 // pred_check
      _
    $region62: #{tpu_custom_call.1} parent=1 // pred_check_branch
      %988 = sbr.rel (0) target = $region64
    $region63: #{tpu_custom_call.1} parent=1 // pred_region
      %s990 = ssub.s32 128, 128
      %991 = vsyncadd [#allocation5], %s990
      %s992 = sshll.u32 [#allocation4], 4
      %s993 = int_to_ptr.vmem [resolvable:$true] %s992
      %998 = dma.vmem_to_hbm [thread:$0]  %s993, 128, %s13, [#allocation5], 64, 64, 4
    $region64: #{tpu_custom_call.1} parent=1 // pred_fallthru
      _
    // Predicated region
    $region65: #{tpu_custom_call.1} parent=1 // pred_check
      _
    $region66: #{tpu_custom_call.1} parent=1 // pred_check_branch
      %1000 = sbr.rel (0) target = $region68
    $region67: #{tpu_custom_call.1} parent=1 // pred_region
      %1001 = dma.done [#allocation5], 128
    $region68: #{tpu_custom_call.1} parent=1 // pred_fallthru
      _
    %1002 = vsyncpa [#allocation5], 1

</llo_original>
